<compile_context>
chip_gen: v6e
topology: v6e:2x2x1
jax: 0.10.0
libtpu: 0.0.40
codegen_flags: <defaults>
</compile_context>

<pallas_src>
import jax
import jax.numpy as jnp
from jax import lax
from jax.experimental import pallas as pl
from jax.experimental.pallas import tpu as pltpu

CIN, COUT, K = 3, 6, 3


def conv2d_kernel(w_ref, b_ref, x_ref, o_ref):
    # w_ref: (COUT*CIN*K*K,)     f32 in SMEM (flattened OIHW weights)
    # b_ref: (COUT,)             f32 in SMEM
    # x_ref: (nb, CIN, H, W)     VMEM block of batch elements
    # o_ref: (nb, COUT, Ho, Wo)  VMEM output block
    nb = x_ref.shape[0]
    H, W = x_ref.shape[2], x_ref.shape[3]
    Ho, Wo = H - K + 1, W - K + 1

    # One live f32 accumulator per output channel, initialized with the bias.
    # These stay live across all 27 taps; nb is capped in the wrapper so they
    # remain register-resident.
    accs = [jnp.full((nb, Ho, Wo), b_ref[co], dtype=jnp.float32)
            for co in range(COUT)]

    # Hoisted-tap MAC stream: each (kh, kw) shifted window is loaded from the
    # VMEM ref once (all input channels together) and reused for the
    # 3 ci x 6 co MACs that consume it.  The per-window cast to f32 keeps the
    # live range bounded (no full f32 copy of the block for bf16 inputs).
    for kh in range(K):
        for kw in range(K):
            win = x_ref[:, :, kh:kh + Ho, kw:kw + Wo].astype(jnp.float32)
            for ci in range(CIN):
                plane = win[:, ci]                         # leading-dim select
                base = ci * (K * K) + kh * K + kw
                for co in range(COUT):
                    wval = w_ref[co * (CIN * K * K) + base]  # SMEM scalar
                    accs[co] = accs[co] + wval * plane

    # Single coalesced store: one dense store stream instead of 6 masked
    # per-channel stores (v5e has a single vector-store slot per bundle).
    o_ref[...] = jnp.stack(accs, axis=1).astype(o_ref.dtype)


def conv2d_pallas(x, w, b):
    """x: (N, CIN, H, W), w: (COUT, CIN, K, K), b: (COUT,)."""
    N, cin, H, W = x.shape
    assert cin == CIN, f"expected {CIN} input channels, got {cin}"
    assert H >= K and W >= K, "spatial dims must be >= kernel size (valid conv)"
    Ho, Wo = H - K + 1, W - K + 1

    # ---- batch-block (nb) selection ---------------------------------------
    # VMEM per image: input + output blocks (double-buffered by the pipeline)
    # plus roughly one more f32 copy's worth of in-kernel temporaries
    # (tap windows + 6 accumulators).
    elems = CIN * H * W + COUT * Ho * Wo
    itemsize = jnp.dtype(x.dtype).itemsize
    per_img_vmem = 2 * 2 * itemsize * elems + 4 * elems
    try:
        vmem_cap = pltpu.get_tpu_info().vmem_capacity_bytes
    except Exception:
        vmem_cap = 64 * 1024 * 1024          # v7x-safe fallback
    budget = vmem_cap // 8                   # ~16 MiB on v5e/v6e, ~8 MiB on v7x
    nb_budget = max(1, budget // per_img_vmem)

    # Keep >= 2-4 grid steps (DMA/compute overlap + megacore split on v7x),
    # cap at 4 images/block so accumulators stay vreg-resident.
    nb = max(1, min(N, 4, nb_budget, pl.cdiv(N, 4)))
    grid = (pl.cdiv(N, nb),)                 # partial last block is masked

    w_flat = w.reshape(-1).astype(jnp.float32)
    b = b.astype(jnp.float32)

    return pl.pallas_call(
        conv2d_kernel,
        out_shape=jax.ShapeDtypeStruct((N, COUT, Ho, Wo), x.dtype),
        grid_spec=pltpu.PrefetchScalarGridSpec(
            num_scalar_prefetch=0,
            grid=grid,
            in_specs=[
                # Grid-invariant scalar operands live in SMEM for the whole
                # kernel (60 floats total).
                pl.BlockSpec(memory_space=pltpu.MemorySpace.SMEM),  # weights
                pl.BlockSpec(memory_space=pltpu.MemorySpace.SMEM),  # bias
                pl.BlockSpec((nb, CIN, H, W), lambda n: (n, 0, 0, 0)),
            ],
            out_specs=pl.BlockSpec((nb, COUT, Ho, Wo), lambda n: (n, 0, 0, 0)),
        ),
        compiler_params=pltpu.CompilerParams(
            dimension_semantics=("parallel",),   # batch blocks are independent
            vmem_limit_bytes=32 * 1024 * 1024,   # <= scoped limit on all gens
        ),
    )(w_flat, b, x)


def conv2d_ref(x, w, b):
    # Pure-JAX reference with exact PyTorch Conv2d semantics (NCHW / OIHW).
    y = lax.conv_general_dilated(
        x, w, window_strides=(1, 1), padding="VALID",
        dimension_numbers=("NCHW", "OIHW", "NCHW"))
    return y + b[None, :, None, None]


if __name__ == "__main__":
    key = jax.random.PRNGKey(0)
    kx, kw, kb = jax.random.split(key, 3)

    N, H, W = 2, 16, 16
    x = jax.random.normal(kx, (N, CIN, H, W), dtype=jnp.float32)

    # Deterministic PyTorch-style uniform init: bound = 1/sqrt(fan_in)
    fan_in = CIN * K * K
    bound = 1.0 / (fan_in ** 0.5)
    w = jax.random.uniform(kw, (COUT, CIN, K, K), jnp.float32, -bound, bound)
    b = jax.random.uniform(kb, (COUT,), jnp.float32, -bound, bound)

    y = conv2d_pallas(x, w, b)
    y = jax.block_until_ready(y)

    y_ref = conv2d_ref(x, w, b)
    assert y.shape == (N, COUT, H - 2, W - 2)
    assert jnp.allclose(y, y_ref, atol=1e-5, rtol=1e-5), "mismatch vs reference"

    print("KERNEL_OK")
</pallas_src>

<mosaic_0001>
module attributes {stable_mosaic.version = 11 : i64} {
  func.func @conv2d_kernel(%arg0: i32, %arg1: memref<162xf32, #tpu.memory_space<smem>>, %arg2: memref<6xf32, #tpu.memory_space<smem>>, %arg3: memref<1x3x16x16xf32, #tpu.memory_space<vmem>>, %arg4: memref<1x6x14x14xf32, #tpu.memory_space<vmem>>) attributes {dimension_semantics = [#tpu.dimension_semantics<parallel>], iteration_bounds = array<i64: 2>, scalar_prefetch = 0 : i64, scratch_operands = 0 : i64, tpu.core_type = #tpu.core_type<tc>, window_params = [{transform_indices = @transform_0, window_bounds = array<i64: 162>}, {transform_indices = @transform_1, window_bounds = array<i64: 6>}, {transform_indices = @transform_2, window_bounds = array<i64: 1, 3, 16, 16>}, {transform_indices = @transform_3, window_bounds = array<i64: 1, 6, 14, 14>}]} {
    %c0 = arith.constant 0 : index
    %0 = memref.load %arg2[%c0] : memref<6xf32, #tpu.memory_space<smem>>
    %1 = vector.broadcast %0 : f32 to vector<1x14x14xf32>
    %c1 = arith.constant 1 : index
    %2 = memref.load %arg2[%c1] : memref<6xf32, #tpu.memory_space<smem>>
    %3 = vector.broadcast %2 : f32 to vector<1x14x14xf32>
    %c2 = arith.constant 2 : index
    %4 = memref.load %arg2[%c2] : memref<6xf32, #tpu.memory_space<smem>>
    %5 = vector.broadcast %4 : f32 to vector<1x14x14xf32>
    %c3 = arith.constant 3 : index
    %6 = memref.load %arg2[%c3] : memref<6xf32, #tpu.memory_space<smem>>
    %7 = vector.broadcast %6 : f32 to vector<1x14x14xf32>
    %c4 = arith.constant 4 : index
    %8 = memref.load %arg2[%c4] : memref<6xf32, #tpu.memory_space<smem>>
    %9 = vector.broadcast %8 : f32 to vector<1x14x14xf32>
    %c5 = arith.constant 5 : index
    %10 = memref.load %arg2[%c5] : memref<6xf32, #tpu.memory_space<smem>>
    %11 = vector.broadcast %10 : f32 to vector<1x14x14xf32>
    %c0_0 = arith.constant 0 : index
    %c0_1 = arith.constant 0 : index
    %c0_2 = arith.constant 0 : index
    %c0_3 = arith.constant 0 : index
    %12 = vector.load %arg3[%c0_0, %c0_1, %c0_2, %c0_3] : memref<1x3x16x16xf32, #tpu.memory_space<vmem>>, vector<1x3x14x14xf32>
    %13 = vector.extract_strided_slice %12 {offsets = [0, 0, 0, 0], sizes = [1, 1, 14, 14], strides = [1, 1, 1, 1]} : vector<1x3x14x14xf32> to vector<1x1x14x14xf32>
    %14 = vector.shape_cast %13 : vector<1x1x14x14xf32> to vector<1x14x14xf32>
    %c0_4 = arith.constant 0 : index
    %15 = memref.load %arg1[%c0_4] : memref<162xf32, #tpu.memory_space<smem>>
    %16 = vector.broadcast %15 : f32 to vector<1x14x14xf32>
    %17 = arith.mulf %16, %14 : vector<1x14x14xf32>
    %18 = arith.addf %1, %17 : vector<1x14x14xf32>
    %c27 = arith.constant 27 : index
    %19 = memref.load %arg1[%c27] : memref<162xf32, #tpu.memory_space<smem>>
    %20 = vector.broadcast %19 : f32 to vector<1x14x14xf32>
    %21 = arith.mulf %20, %14 : vector<1x14x14xf32>
    %22 = arith.addf %3, %21 : vector<1x14x14xf32>
    %c54 = arith.constant 54 : index
    %23 = memref.load %arg1[%c54] : memref<162xf32, #tpu.memory_space<smem>>
    %24 = vector.broadcast %23 : f32 to vector<1x14x14xf32>
    %25 = arith.mulf %24, %14 : vector<1x14x14xf32>
    %26 = arith.addf %5, %25 : vector<1x14x14xf32>
    %c81 = arith.constant 81 : index
    %27 = memref.load %arg1[%c81] : memref<162xf32, #tpu.memory_space<smem>>
    %28 = vector.broadcast %27 : f32 to vector<1x14x14xf32>
    %29 = arith.mulf %28, %14 : vector<1x14x14xf32>
    %30 = arith.addf %7, %29 : vector<1x14x14xf32>
    %c108 = arith.constant 108 : index
    %31 = memref.load %arg1[%c108] : memref<162xf32, #tpu.memory_space<smem>>
    %32 = vector.broadcast %31 : f32 to vector<1x14x14xf32>
    %33 = arith.mulf %32, %14 : vector<1x14x14xf32>
    %34 = arith.addf %9, %33 : vector<1x14x14xf32>
    %c135 = arith.constant 135 : index
    %35 = memref.load %arg1[%c135] : memref<162xf32, #tpu.memory_space<smem>>
    %36 = vector.broadcast %35 : f32 to vector<1x14x14xf32>
    %37 = arith.mulf %36, %14 : vector<1x14x14xf32>
    %38 = arith.addf %11, %37 : vector<1x14x14xf32>
    %39 = vector.extract_strided_slice %12 {offsets = [0, 1, 0, 0], sizes = [1, 1, 14, 14], strides = [1, 1, 1, 1]} : vector<1x3x14x14xf32> to vector<1x1x14x14xf32>
    %40 = vector.shape_cast %39 : vector<1x1x14x14xf32> to vector<1x14x14xf32>
    %c9 = arith.constant 9 : index
    %41 = memref.load %arg1[%c9] : memref<162xf32, #tpu.memory_space<smem>>
    %42 = vector.broadcast %41 : f32 to vector<1x14x14xf32>
    %43 = arith.mulf %42, %40 : vector<1x14x14xf32>
    %44 = arith.addf %18, %43 : vector<1x14x14xf32>
    %c36 = arith.constant 36 : index
    %45 = memref.load %arg1[%c36] : memref<162xf32, #tpu.memory_space<smem>>
    %46 = vector.broadcast %45 : f32 to vector<1x14x14xf32>
    %47 = arith.mulf %46, %40 : vector<1x14x14xf32>
    %48 = arith.addf %22, %47 : vector<1x14x14xf32>
    %c63 = arith.constant 63 : index
    %49 = memref.load %arg1[%c63] : memref<162xf32, #tpu.memory_space<smem>>
    %50 = vector.broadcast %49 : f32 to vector<1x14x14xf32>
    %51 = arith.mulf %50, %40 : vector<1x14x14xf32>
    %52 = arith.addf %26, %51 : vector<1x14x14xf32>
    %c90 = arith.constant 90 : index
    %53 = memref.load %arg1[%c90] : memref<162xf32, #tpu.memory_space<smem>>
    %54 = vector.broadcast %53 : f32 to vector<1x14x14xf32>
    %55 = arith.mulf %54, %40 : vector<1x14x14xf32>
    %56 = arith.addf %30, %55 : vector<1x14x14xf32>
    %c117 = arith.constant 117 : index
    %57 = memref.load %arg1[%c117] : memref<162xf32, #tpu.memory_space<smem>>
    %58 = vector.broadcast %57 : f32 to vector<1x14x14xf32>
    %59 = arith.mulf %58, %40 : vector<1x14x14xf32>
    %60 = arith.addf %34, %59 : vector<1x14x14xf32>
    %c144 = arith.constant 144 : index
    %61 = memref.load %arg1[%c144] : memref<162xf32, #tpu.memory_space<smem>>
    %62 = vector.broadcast %61 : f32 to vector<1x14x14xf32>
    %63 = arith.mulf %62, %40 : vector<1x14x14xf32>
    %64 = arith.addf %38, %63 : vector<1x14x14xf32>
    %65 = vector.extract_strided_slice %12 {offsets = [0, 2, 0, 0], sizes = [1, 1, 14, 14], strides = [1, 1, 1, 1]} : vector<1x3x14x14xf32> to vector<1x1x14x14xf32>
    %66 = vector.shape_cast %65 : vector<1x1x14x14xf32> to vector<1x14x14xf32>
    %c18 = arith.constant 18 : index
    %67 = memref.load %arg1[%c18] : memref<162xf32, #tpu.memory_space<smem>>
    %68 = vector.broadcast %67 : f32 to vector<1x14x14xf32>
    %69 = arith.mulf %68, %66 : vector<1x14x14xf32>
    %70 = arith.addf %44, %69 : vector<1x14x14xf32>
    %c45 = arith.constant 45 : index
    %71 = memref.load %arg1[%c45] : memref<162xf32, #tpu.memory_space<smem>>
    %72 = vector.broadcast %71 : f32 to vector<1x14x14xf32>
    %73 = arith.mulf %72, %66 : vector<1x14x14xf32>
    %74 = arith.addf %48, %73 : vector<1x14x14xf32>
    %c72 = arith.constant 72 : index
    %75 = memref.load %arg1[%c72] : memref<162xf32, #tpu.memory_space<smem>>
    %76 = vector.broadcast %75 : f32 to vector<1x14x14xf32>
    %77 = arith.mulf %76, %66 : vector<1x14x14xf32>
    %78 = arith.addf %52, %77 : vector<1x14x14xf32>
    %c99 = arith.constant 99 : index
    %79 = memref.load %arg1[%c99] : memref<162xf32, #tpu.memory_space<smem>>
    %80 = vector.broadcast %79 : f32 to vector<1x14x14xf32>
    %81 = arith.mulf %80, %66 : vector<1x14x14xf32>
    %82 = arith.addf %56, %81 : vector<1x14x14xf32>
    %c126 = arith.constant 126 : index
    %83 = memref.load %arg1[%c126] : memref<162xf32, #tpu.memory_space<smem>>
    %84 = vector.broadcast %83 : f32 to vector<1x14x14xf32>
    %85 = arith.mulf %84, %66 : vector<1x14x14xf32>
    %86 = arith.addf %60, %85 : vector<1x14x14xf32>
    %c153 = arith.constant 153 : index
    %87 = memref.load %arg1[%c153] : memref<162xf32, #tpu.memory_space<smem>>
    %88 = vector.broadcast %87 : f32 to vector<1x14x14xf32>
    %89 = arith.mulf %88, %66 : vector<1x14x14xf32>
    %90 = arith.addf %64, %89 : vector<1x14x14xf32>
    %c0_5 = arith.constant 0 : index
    %c0_6 = arith.constant 0 : index
    %c0_7 = arith.constant 0 : index
    %c1_8 = arith.constant 1 : index
    %91 = vector.load %arg3[%c0_5, %c0_6, %c0_7, %c1_8] : memref<1x3x16x16xf32, #tpu.memory_space<vmem>>, vector<1x3x14x14xf32>
    %92 = vector.extract_strided_slice %91 {offsets = [0, 0, 0, 0], sizes = [1, 1, 14, 14], strides = [1, 1, 1, 1]} : vector<1x3x14x14xf32> to vector<1x1x14x14xf32>
    %93 = vector.shape_cast %92 : vector<1x1x14x14xf32> to vector<1x14x14xf32>
    %c1_9 = arith.constant 1 : index
    %94 = memref.load %arg1[%c1_9] : memref<162xf32, #tpu.memory_space<smem>>
    %95 = vector.broadcast %94 : f32 to vector<1x14x14xf32>
    %96 = arith.mulf %95, %93 : vector<1x14x14xf32>
    %97 = arith.addf %70, %96 : vector<1x14x14xf32>
    %c28 = arith.constant 28 : index
    %98 = memref.load %arg1[%c28] : memref<162xf32, #tpu.memory_space<smem>>
    %99 = vector.broadcast %98 : f32 to vector<1x14x14xf32>
    %100 = arith.mulf %99, %93 : vector<1x14x14xf32>
    %101 = arith.addf %74, %100 : vector<1x14x14xf32>
    %c55 = arith.constant 55 : index
    %102 = memref.load %arg1[%c55] : memref<162xf32, #tpu.memory_space<smem>>
    %103 = vector.broadcast %102 : f32 to vector<1x14x14xf32>
    %104 = arith.mulf %103, %93 : vector<1x14x14xf32>
    %105 = arith.addf %78, %104 : vector<1x14x14xf32>
    %c82 = arith.constant 82 : index
    %106 = memref.load %arg1[%c82] : memref<162xf32, #tpu.memory_space<smem>>
    %107 = vector.broadcast %106 : f32 to vector<1x14x14xf32>
    %108 = arith.mulf %107, %93 : vector<1x14x14xf32>
    %109 = arith.addf %82, %108 : vector<1x14x14xf32>
    %c109 = arith.constant 109 : index
    %110 = memref.load %arg1[%c109] : memref<162xf32, #tpu.memory_space<smem>>
    %111 = vector.broadcast %110 : f32 to vector<1x14x14xf32>
    %112 = arith.mulf %111, %93 : vector<1x14x14xf32>
    %113 = arith.addf %86, %112 : vector<1x14x14xf32>
    %c136 = arith.constant 136 : index
    %114 = memref.load %arg1[%c136] : memref<162xf32, #tpu.memory_space<smem>>
    %115 = vector.broadcast %114 : f32 to vector<1x14x14xf32>
    %116 = arith.mulf %115, %93 : vector<1x14x14xf32>
    %117 = arith.addf %90, %116 : vector<1x14x14xf32>
    %118 = vector.extract_strided_slice %91 {offsets = [0, 1, 0, 0], sizes = [1, 1, 14, 14], strides = [1, 1, 1, 1]} : vector<1x3x14x14xf32> to vector<1x1x14x14xf32>
    %119 = vector.shape_cast %118 : vector<1x1x14x14xf32> to vector<1x14x14xf32>
    %c10 = arith.constant 10 : index
    %120 = memref.load %arg1[%c10] : memref<162xf32, #tpu.memory_space<smem>>
    %121 = vector.broadcast %120 : f32 to vector<1x14x14xf32>
    %122 = arith.mulf %121, %119 : vector<1x14x14xf32>
    %123 = arith.addf %97, %122 : vector<1x14x14xf32>
    %c37 = arith.constant 37 : index
    %124 = memref.load %arg1[%c37] : memref<162xf32, #tpu.memory_space<smem>>
    %125 = vector.broadcast %124 : f32 to vector<1x14x14xf32>
    %126 = arith.mulf %125, %119 : vector<1x14x14xf32>
    %127 = arith.addf %101, %126 : vector<1x14x14xf32>
    %c64 = arith.constant 64 : index
    %128 = memref.load %arg1[%c64] : memref<162xf32, #tpu.memory_space<smem>>
    %129 = vector.broadcast %128 : f32 to vector<1x14x14xf32>
    %130 = arith.mulf %129, %119 : vector<1x14x14xf32>
    %131 = arith.addf %105, %130 : vector<1x14x14xf32>
    %c91 = arith.constant 91 : index
    %132 = memref.load %arg1[%c91] : memref<162xf32, #tpu.memory_space<smem>>
    %133 = vector.broadcast %132 : f32 to vector<1x14x14xf32>
    %134 = arith.mulf %133, %119 : vector<1x14x14xf32>
    %135 = arith.addf %109, %134 : vector<1x14x14xf32>
    %c118 = arith.constant 118 : index
    %136 = memref.load %arg1[%c118] : memref<162xf32, #tpu.memory_space<smem>>
    %137 = vector.broadcast %136 : f32 to vector<1x14x14xf32>
    %138 = arith.mulf %137, %119 : vector<1x14x14xf32>
    %139 = arith.addf %113, %138 : vector<1x14x14xf32>
    %c145 = arith.constant 145 : index
    %140 = memref.load %arg1[%c145] : memref<162xf32, #tpu.memory_space<smem>>
    %141 = vector.broadcast %140 : f32 to vector<1x14x14xf32>
    %142 = arith.mulf %141, %119 : vector<1x14x14xf32>
    %143 = arith.addf %117, %142 : vector<1x14x14xf32>
    %144 = vector.extract_strided_slice %91 {offsets = [0, 2, 0, 0], sizes = [1, 1, 14, 14], strides = [1, 1, 1, 1]} : vector<1x3x14x14xf32> to vector<1x1x14x14xf32>
    %145 = vector.shape_cast %144 : vector<1x1x14x14xf32> to vector<1x14x14xf32>
    %c19 = arith.constant 19 : index
    %146 = memref.load %arg1[%c19] : memref<162xf32, #tpu.memory_space<smem>>
    %147 = vector.broadcast %146 : f32 to vector<1x14x14xf32>
    %148 = arith.mulf %147, %145 : vector<1x14x14xf32>
    %149 = arith.addf %123, %148 : vector<1x14x14xf32>
    %c46 = arith.constant 46 : index
    %150 = memref.load %arg1[%c46] : memref<162xf32, #tpu.memory_space<smem>>
    %151 = vector.broadcast %150 : f32 to vector<1x14x14xf32>
    %152 = arith.mulf %151, %145 : vector<1x14x14xf32>
    %153 = arith.addf %127, %152 : vector<1x14x14xf32>
    %c73 = arith.constant 73 : index
    %154 = memref.load %arg1[%c73] : memref<162xf32, #tpu.memory_space<smem>>
    %155 = vector.broadcast %154 : f32 to vector<1x14x14xf32>
    %156 = arith.mulf %155, %145 : vector<1x14x14xf32>
    %157 = arith.addf %131, %156 : vector<1x14x14xf32>
    %c100 = arith.constant 100 : index
    %158 = memref.load %arg1[%c100] : memref<162xf32, #tpu.memory_space<smem>>
    %159 = vector.broadcast %158 : f32 to vector<1x14x14xf32>
    %160 = arith.mulf %159, %145 : vector<1x14x14xf32>
    %161 = arith.addf %135, %160 : vector<1x14x14xf32>
    %c127 = arith.constant 127 : index
    %162 = memref.load %arg1[%c127] : memref<162xf32, #tpu.memory_space<smem>>
    %163 = vector.broadcast %162 : f32 to vector<1x14x14xf32>
    %164 = arith.mulf %163, %145 : vector<1x14x14xf32>
    %165 = arith.addf %139, %164 : vector<1x14x14xf32>
    %c154 = arith.constant 154 : index
    %166 = memref.load %arg1[%c154] : memref<162xf32, #tpu.memory_space<smem>>
    %167 = vector.broadcast %166 : f32 to vector<1x14x14xf32>
    %168 = arith.mulf %167, %145 : vector<1x14x14xf32>
    %169 = arith.addf %143, %168 : vector<1x14x14xf32>
    %c0_10 = arith.constant 0 : index
    %c0_11 = arith.constant 0 : index
    %c0_12 = arith.constant 0 : index
    %c2_13 = arith.constant 2 : index
    %170 = vector.load %arg3[%c0_10, %c0_11, %c0_12, %c2_13] : memref<1x3x16x16xf32, #tpu.memory_space<vmem>>, vector<1x3x14x14xf32>
    %171 = vector.extract_strided_slice %170 {offsets = [0, 0, 0, 0], sizes = [1, 1, 14, 14], strides = [1, 1, 1, 1]} : vector<1x3x14x14xf32> to vector<1x1x14x14xf32>
    %172 = vector.shape_cast %171 : vector<1x1x14x14xf32> to vector<1x14x14xf32>
    %c2_14 = arith.constant 2 : index
    %173 = memref.load %arg1[%c2_14] : memref<162xf32, #tpu.memory_space<smem>>
    %174 = vector.broadcast %173 : f32 to vector<1x14x14xf32>
    %175 = arith.mulf %174, %172 : vector<1x14x14xf32>
    %176 = arith.addf %149, %175 : vector<1x14x14xf32>
    %c29 = arith.constant 29 : index
    %177 = memref.load %arg1[%c29] : memref<162xf32, #tpu.memory_space<smem>>
    %178 = vector.broadcast %177 : f32 to vector<1x14x14xf32>
    %179 = arith.mulf %178, %172 : vector<1x14x14xf32>
    %180 = arith.addf %153, %179 : vector<1x14x14xf32>
    %c56 = arith.constant 56 : index
    %181 = memref.load %arg1[%c56] : memref<162xf32, #tpu.memory_space<smem>>
    %182 = vector.broadcast %181 : f32 to vector<1x14x14xf32>
    %183 = arith.mulf %182, %172 : vector<1x14x14xf32>
    %184 = arith.addf %157, %183 : vector<1x14x14xf32>
    %c83 = arith.constant 83 : index
    %185 = memref.load %arg1[%c83] : memref<162xf32, #tpu.memory_space<smem>>
    %186 = vector.broadcast %185 : f32 to vector<1x14x14xf32>
    %187 = arith.mulf %186, %172 : vector<1x14x14xf32>
    %188 = arith.addf %161, %187 : vector<1x14x14xf32>
    %c110 = arith.constant 110 : index
    %189 = memref.load %arg1[%c110] : memref<162xf32, #tpu.memory_space<smem>>
    %190 = vector.broadcast %189 : f32 to vector<1x14x14xf32>
    %191 = arith.mulf %190, %172 : vector<1x14x14xf32>
    %192 = arith.addf %165, %191 : vector<1x14x14xf32>
    %c137 = arith.constant 137 : index
    %193 = memref.load %arg1[%c137] : memref<162xf32, #tpu.memory_space<smem>>
    %194 = vector.broadcast %193 : f32 to vector<1x14x14xf32>
    %195 = arith.mulf %194, %172 : vector<1x14x14xf32>
    %196 = arith.addf %169, %195 : vector<1x14x14xf32>
    %197 = vector.extract_strided_slice %170 {offsets = [0, 1, 0, 0], sizes = [1, 1, 14, 14], strides = [1, 1, 1, 1]} : vector<1x3x14x14xf32> to vector<1x1x14x14xf32>
    %198 = vector.shape_cast %197 : vector<1x1x14x14xf32> to vector<1x14x14xf32>
    %c11 = arith.constant 11 : index
    %199 = memref.load %arg1[%c11] : memref<162xf32, #tpu.memory_space<smem>>
    %200 = vector.broadcast %199 : f32 to vector<1x14x14xf32>
    %201 = arith.mulf %200, %198 : vector<1x14x14xf32>
    %202 = arith.addf %176, %201 : vector<1x14x14xf32>
    %c38 = arith.constant 38 : index
    %203 = memref.load %arg1[%c38] : memref<162xf32, #tpu.memory_space<smem>>
    %204 = vector.broadcast %203 : f32 to vector<1x14x14xf32>
    %205 = arith.mulf %204, %198 : vector<1x14x14xf32>
    %206 = arith.addf %180, %205 : vector<1x14x14xf32>
    %c65 = arith.constant 65 : index
    %207 = memref.load %arg1[%c65] : memref<162xf32, #tpu.memory_space<smem>>
    %208 = vector.broadcast %207 : f32 to vector<1x14x14xf32>
    %209 = arith.mulf %208, %198 : vector<1x14x14xf32>
    %210 = arith.addf %184, %209 : vector<1x14x14xf32>
    %c92 = arith.constant 92 : index
    %211 = memref.load %arg1[%c92] : memref<162xf32, #tpu.memory_space<smem>>
    %212 = vector.broadcast %211 : f32 to vector<1x14x14xf32>
    %213 = arith.mulf %212, %198 : vector<1x14x14xf32>
    %214 = arith.addf %188, %213 : vector<1x14x14xf32>
    %c119 = arith.constant 119 : index
    %215 = memref.load %arg1[%c119] : memref<162xf32, #tpu.memory_space<smem>>
    %216 = vector.broadcast %215 : f32 to vector<1x14x14xf32>
    %217 = arith.mulf %216, %198 : vector<1x14x14xf32>
    %218 = arith.addf %192, %217 : vector<1x14x14xf32>
    %c146 = arith.constant 146 : index
    %219 = memref.load %arg1[%c146] : memref<162xf32, #tpu.memory_space<smem>>
    %220 = vector.broadcast %219 : f32 to vector<1x14x14xf32>
    %221 = arith.mulf %220, %198 : vector<1x14x14xf32>
    %222 = arith.addf %196, %221 : vector<1x14x14xf32>
    %223 = vector.extract_strided_slice %170 {offsets = [0, 2, 0, 0], sizes = [1, 1, 14, 14], strides = [1, 1, 1, 1]} : vector<1x3x14x14xf32> to vector<1x1x14x14xf32>
    %224 = vector.shape_cast %223 : vector<1x1x14x14xf32> to vector<1x14x14xf32>
    %c20 = arith.constant 20 : index
    %225 = memref.load %arg1[%c20] : memref<162xf32, #tpu.memory_space<smem>>
    %226 = vector.broadcast %225 : f32 to vector<1x14x14xf32>
    %227 = arith.mulf %226, %224 : vector<1x14x14xf32>
    %228 = arith.addf %202, %227 : vector<1x14x14xf32>
    %c47 = arith.constant 47 : index
    %229 = memref.load %arg1[%c47] : memref<162xf32, #tpu.memory_space<smem>>
    %230 = vector.broadcast %229 : f32 to vector<1x14x14xf32>
    %231 = arith.mulf %230, %224 : vector<1x14x14xf32>
    %232 = arith.addf %206, %231 : vector<1x14x14xf32>
    %c74 = arith.constant 74 : index
    %233 = memref.load %arg1[%c74] : memref<162xf32, #tpu.memory_space<smem>>
    %234 = vector.broadcast %233 : f32 to vector<1x14x14xf32>
    %235 = arith.mulf %234, %224 : vector<1x14x14xf32>
    %236 = arith.addf %210, %235 : vector<1x14x14xf32>
    %c101 = arith.constant 101 : index
    %237 = memref.load %arg1[%c101] : memref<162xf32, #tpu.memory_space<smem>>
    %238 = vector.broadcast %237 : f32 to vector<1x14x14xf32>
    %239 = arith.mulf %238, %224 : vector<1x14x14xf32>
    %240 = arith.addf %214, %239 : vector<1x14x14xf32>
    %c128 = arith.constant 128 : index
    %241 = memref.load %arg1[%c128] : memref<162xf32, #tpu.memory_space<smem>>
    %242 = vector.broadcast %241 : f32 to vector<1x14x14xf32>
    %243 = arith.mulf %242, %224 : vector<1x14x14xf32>
    %244 = arith.addf %218, %243 : vector<1x14x14xf32>
    %c155 = arith.constant 155 : index
    %245 = memref.load %arg1[%c155] : memref<162xf32, #tpu.memory_space<smem>>
    %246 = vector.broadcast %245 : f32 to vector<1x14x14xf32>
    %247 = arith.mulf %246, %224 : vector<1x14x14xf32>
    %248 = arith.addf %222, %247 : vector<1x14x14xf32>
    %c0_15 = arith.constant 0 : index
    %c0_16 = arith.constant 0 : index
    %c1_17 = arith.constant 1 : index
    %c0_18 = arith.constant 0 : index
    %249 = vector.load %arg3[%c0_15, %c0_16, %c1_17, %c0_18] : memref<1x3x16x16xf32, #tpu.memory_space<vmem>>, vector<1x3x14x14xf32>
    %250 = vector.extract_strided_slice %249 {offsets = [0, 0, 0, 0], sizes = [1, 1, 14, 14], strides = [1, 1, 1, 1]} : vector<1x3x14x14xf32> to vector<1x1x14x14xf32>
    %251 = vector.shape_cast %250 : vector<1x1x14x14xf32> to vector<1x14x14xf32>
    %c3_19 = arith.constant 3 : index
    %252 = memref.load %arg1[%c3_19] : memref<162xf32, #tpu.memory_space<smem>>
    %253 = vector.broadcast %252 : f32 to vector<1x14x14xf32>
    %254 = arith.mulf %253, %251 : vector<1x14x14xf32>
    %255 = arith.addf %228, %254 : vector<1x14x14xf32>
    %c30 = arith.constant 30 : index
    %256 = memref.load %arg1[%c30] : memref<162xf32, #tpu.memory_space<smem>>
    %257 = vector.broadcast %256 : f32 to vector<1x14x14xf32>
    %258 = arith.mulf %257, %251 : vector<1x14x14xf32>
    %259 = arith.addf %232, %258 : vector<1x14x14xf32>
    %c57 = arith.constant 57 : index
    %260 = memref.load %arg1[%c57] : memref<162xf32, #tpu.memory_space<smem>>
    %261 = vector.broadcast %260 : f32 to vector<1x14x14xf32>
    %262 = arith.mulf %261, %251 : vector<1x14x14xf32>
    %263 = arith.addf %236, %262 : vector<1x14x14xf32>
    %c84 = arith.constant 84 : index
    %264 = memref.load %arg1[%c84] : memref<162xf32, #tpu.memory_space<smem>>
    %265 = vector.broadcast %264 : f32 to vector<1x14x14xf32>
    %266 = arith.mulf %265, %251 : vector<1x14x14xf32>
    %267 = arith.addf %240, %266 : vector<1x14x14xf32>
    %c111 = arith.constant 111 : index
    %268 = memref.load %arg1[%c111] : memref<162xf32, #tpu.memory_space<smem>>
    %269 = vector.broadcast %268 : f32 to vector<1x14x14xf32>
    %270 = arith.mulf %269, %251 : vector<1x14x14xf32>
    %271 = arith.addf %244, %270 : vector<1x14x14xf32>
    %c138 = arith.constant 138 : index
    %272 = memref.load %arg1[%c138] : memref<162xf32, #tpu.memory_space<smem>>
    %273 = vector.broadcast %272 : f32 to vector<1x14x14xf32>
    %274 = arith.mulf %273, %251 : vector<1x14x14xf32>
    %275 = arith.addf %248, %274 : vector<1x14x14xf32>
    %276 = vector.extract_strided_slice %249 {offsets = [0, 1, 0, 0], sizes = [1, 1, 14, 14], strides = [1, 1, 1, 1]} : vector<1x3x14x14xf32> to vector<1x1x14x14xf32>
    %277 = vector.shape_cast %276 : vector<1x1x14x14xf32> to vector<1x14x14xf32>
    %c12 = arith.constant 12 : index
    %278 = memref.load %arg1[%c12] : memref<162xf32, #tpu.memory_space<smem>>
    %279 = vector.broadcast %278 : f32 to vector<1x14x14xf32>
    %280 = arith.mulf %279, %277 : vector<1x14x14xf32>
    %281 = arith.addf %255, %280 : vector<1x14x14xf32>
    %c39 = arith.constant 39 : index
    %282 = memref.load %arg1[%c39] : memref<162xf32, #tpu.memory_space<smem>>
    %283 = vector.broadcast %282 : f32 to vector<1x14x14xf32>
    %284 = arith.mulf %283, %277 : vector<1x14x14xf32>
    %285 = arith.addf %259, %284 : vector<1x14x14xf32>
    %c66 = arith.constant 66 : index
    %286 = memref.load %arg1[%c66] : memref<162xf32, #tpu.memory_space<smem>>
    %287 = vector.broadcast %286 : f32 to vector<1x14x14xf32>
    %288 = arith.mulf %287, %277 : vector<1x14x14xf32>
    %289 = arith.addf %263, %288 : vector<1x14x14xf32>
    %c93 = arith.constant 93 : index
    %290 = memref.load %arg1[%c93] : memref<162xf32, #tpu.memory_space<smem>>
    %291 = vector.broadcast %290 : f32 to vector<1x14x14xf32>
    %292 = arith.mulf %291, %277 : vector<1x14x14xf32>
    %293 = arith.addf %267, %292 : vector<1x14x14xf32>
    %c120 = arith.constant 120 : index
    %294 = memref.load %arg1[%c120] : memref<162xf32, #tpu.memory_space<smem>>
    %295 = vector.broadcast %294 : f32 to vector<1x14x14xf32>
    %296 = arith.mulf %295, %277 : vector<1x14x14xf32>
    %297 = arith.addf %271, %296 : vector<1x14x14xf32>
    %c147 = arith.constant 147 : index
    %298 = memref.load %arg1[%c147] : memref<162xf32, #tpu.memory_space<smem>>
    %299 = vector.broadcast %298 : f32 to vector<1x14x14xf32>
    %300 = arith.mulf %299, %277 : vector<1x14x14xf32>
    %301 = arith.addf %275, %300 : vector<1x14x14xf32>
    %302 = vector.extract_strided_slice %249 {offsets = [0, 2, 0, 0], sizes = [1, 1, 14, 14], strides = [1, 1, 1, 1]} : vector<1x3x14x14xf32> to vector<1x1x14x14xf32>
    %303 = vector.shape_cast %302 : vector<1x1x14x14xf32> to vector<1x14x14xf32>
    %c21 = arith.constant 21 : index
    %304 = memref.load %arg1[%c21] : memref<162xf32, #tpu.memory_space<smem>>
    %305 = vector.broadcast %304 : f32 to vector<1x14x14xf32>
    %306 = arith.mulf %305, %303 : vector<1x14x14xf32>
    %307 = arith.addf %281, %306 : vector<1x14x14xf32>
    %c48 = arith.constant 48 : index
    %308 = memref.load %arg1[%c48] : memref<162xf32, #tpu.memory_space<smem>>
    %309 = vector.broadcast %308 : f32 to vector<1x14x14xf32>
    %310 = arith.mulf %309, %303 : vector<1x14x14xf32>
    %311 = arith.addf %285, %310 : vector<1x14x14xf32>
    %c75 = arith.constant 75 : index
    %312 = memref.load %arg1[%c75] : memref<162xf32, #tpu.memory_space<smem>>
    %313 = vector.broadcast %312 : f32 to vector<1x14x14xf32>
    %314 = arith.mulf %313, %303 : vector<1x14x14xf32>
    %315 = arith.addf %289, %314 : vector<1x14x14xf32>
    %c102 = arith.constant 102 : index
    %316 = memref.load %arg1[%c102] : memref<162xf32, #tpu.memory_space<smem>>
    %317 = vector.broadcast %316 : f32 to vector<1x14x14xf32>
    %318 = arith.mulf %317, %303 : vector<1x14x14xf32>
    %319 = arith.addf %293, %318 : vector<1x14x14xf32>
    %c129 = arith.constant 129 : index
    %320 = memref.load %arg1[%c129] : memref<162xf32, #tpu.memory_space<smem>>
    %321 = vector.broadcast %320 : f32 to vector<1x14x14xf32>
    %322 = arith.mulf %321, %303 : vector<1x14x14xf32>
    %323 = arith.addf %297, %322 : vector<1x14x14xf32>
    %c156 = arith.constant 156 : index
    %324 = memref.load %arg1[%c156] : memref<162xf32, #tpu.memory_space<smem>>
    %325 = vector.broadcast %324 : f32 to vector<1x14x14xf32>
    %326 = arith.mulf %325, %303 : vector<1x14x14xf32>
    %327 = arith.addf %301, %326 : vector<1x14x14xf32>
    %c0_20 = arith.constant 0 : index
    %c0_21 = arith.constant 0 : index
    %c1_22 = arith.constant 1 : index
    %c1_23 = arith.constant 1 : index
    %328 = vector.load %arg3[%c0_20, %c0_21, %c1_22, %c1_23] : memref<1x3x16x16xf32, #tpu.memory_space<vmem>>, vector<1x3x14x14xf32>
    %329 = vector.extract_strided_slice %328 {offsets = [0, 0, 0, 0], sizes = [1, 1, 14, 14], strides = [1, 1, 1, 1]} : vector<1x3x14x14xf32> to vector<1x1x14x14xf32>
    %330 = vector.shape_cast %329 : vector<1x1x14x14xf32> to vector<1x14x14xf32>
    %c4_24 = arith.constant 4 : index
    %331 = memref.load %arg1[%c4_24] : memref<162xf32, #tpu.memory_space<smem>>
    %332 = vector.broadcast %331 : f32 to vector<1x14x14xf32>
    %333 = arith.mulf %332, %330 : vector<1x14x14xf32>
    %334 = arith.addf %307, %333 : vector<1x14x14xf32>
    %c31 = arith.constant 31 : index
    %335 = memref.load %arg1[%c31] : memref<162xf32, #tpu.memory_space<smem>>
    %336 = vector.broadcast %335 : f32 to vector<1x14x14xf32>
    %337 = arith.mulf %336, %330 : vector<1x14x14xf32>
    %338 = arith.addf %311, %337 : vector<1x14x14xf32>
    %c58 = arith.constant 58 : index
    %339 = memref.load %arg1[%c58] : memref<162xf32, #tpu.memory_space<smem>>
    %340 = vector.broadcast %339 : f32 to vector<1x14x14xf32>
    %341 = arith.mulf %340, %330 : vector<1x14x14xf32>
    %342 = arith.addf %315, %341 : vector<1x14x14xf32>
    %c85 = arith.constant 85 : index
    %343 = memref.load %arg1[%c85] : memref<162xf32, #tpu.memory_space<smem>>
    %344 = vector.broadcast %343 : f32 to vector<1x14x14xf32>
    %345 = arith.mulf %344, %330 : vector<1x14x14xf32>
    %346 = arith.addf %319, %345 : vector<1x14x14xf32>
    %c112 = arith.constant 112 : index
    %347 = memref.load %arg1[%c112] : memref<162xf32, #tpu.memory_space<smem>>
    %348 = vector.broadcast %347 : f32 to vector<1x14x14xf32>
    %349 = arith.mulf %348, %330 : vector<1x14x14xf32>
    %350 = arith.addf %323, %349 : vector<1x14x14xf32>
    %c139 = arith.constant 139 : index
    %351 = memref.load %arg1[%c139] : memref<162xf32, #tpu.memory_space<smem>>
    %352 = vector.broadcast %351 : f32 to vector<1x14x14xf32>
    %353 = arith.mulf %352, %330 : vector<1x14x14xf32>
    %354 = arith.addf %327, %353 : vector<1x14x14xf32>
    %355 = vector.extract_strided_slice %328 {offsets = [0, 1, 0, 0], sizes = [1, 1, 14, 14], strides = [1, 1, 1, 1]} : vector<1x3x14x14xf32> to vector<1x1x14x14xf32>
    %356 = vector.shape_cast %355 : vector<1x1x14x14xf32> to vector<1x14x14xf32>
    %c13 = arith.constant 13 : index
    %357 = memref.load %arg1[%c13] : memref<162xf32, #tpu.memory_space<smem>>
    %358 = vector.broadcast %357 : f32 to vector<1x14x14xf32>
    %359 = arith.mulf %358, %356 : vector<1x14x14xf32>
    %360 = arith.addf %334, %359 : vector<1x14x14xf32>
    %c40 = arith.constant 40 : index
    %361 = memref.load %arg1[%c40] : memref<162xf32, #tpu.memory_space<smem>>
    %362 = vector.broadcast %361 : f32 to vector<1x14x14xf32>
    %363 = arith.mulf %362, %356 : vector<1x14x14xf32>
    %364 = arith.addf %338, %363 : vector<1x14x14xf32>
    %c67 = arith.constant 67 : index
    %365 = memref.load %arg1[%c67] : memref<162xf32, #tpu.memory_space<smem>>
    %366 = vector.broadcast %365 : f32 to vector<1x14x14xf32>
    %367 = arith.mulf %366, %356 : vector<1x14x14xf32>
    %368 = arith.addf %342, %367 : vector<1x14x14xf32>
    %c94 = arith.constant 94 : index
    %369 = memref.load %arg1[%c94] : memref<162xf32, #tpu.memory_space<smem>>
    %370 = vector.broadcast %369 : f32 to vector<1x14x14xf32>
    %371 = arith.mulf %370, %356 : vector<1x14x14xf32>
    %372 = arith.addf %346, %371 : vector<1x14x14xf32>
    %c121 = arith.constant 121 : index
    %373 = memref.load %arg1[%c121] : memref<162xf32, #tpu.memory_space<smem>>
    %374 = vector.broadcast %373 : f32 to vector<1x14x14xf32>
    %375 = arith.mulf %374, %356 : vector<1x14x14xf32>
    %376 = arith.addf %350, %375 : vector<1x14x14xf32>
    %c148 = arith.constant 148 : index
    %377 = memref.load %arg1[%c148] : memref<162xf32, #tpu.memory_space<smem>>
    %378 = vector.broadcast %377 : f32 to vector<1x14x14xf32>
    %379 = arith.mulf %378, %356 : vector<1x14x14xf32>
    %380 = arith.addf %354, %379 : vector<1x14x14xf32>
    %381 = vector.extract_strided_slice %328 {offsets = [0, 2, 0, 0], sizes = [1, 1, 14, 14], strides = [1, 1, 1, 1]} : vector<1x3x14x14xf32> to vector<1x1x14x14xf32>
    %382 = vector.shape_cast %381 : vector<1x1x14x14xf32> to vector<1x14x14xf32>
    %c22 = arith.constant 22 : index
    %383 = memref.load %arg1[%c22] : memref<162xf32, #tpu.memory_space<smem>>
    %384 = vector.broadcast %383 : f32 to vector<1x14x14xf32>
    %385 = arith.mulf %384, %382 : vector<1x14x14xf32>
    %386 = arith.addf %360, %385 : vector<1x14x14xf32>
    %c49 = arith.constant 49 : index
    %387 = memref.load %arg1[%c49] : memref<162xf32, #tpu.memory_space<smem>>
    %388 = vector.broadcast %387 : f32 to vector<1x14x14xf32>
    %389 = arith.mulf %388, %382 : vector<1x14x14xf32>
    %390 = arith.addf %364, %389 : vector<1x14x14xf32>
    %c76 = arith.constant 76 : index
    %391 = memref.load %arg1[%c76] : memref<162xf32, #tpu.memory_space<smem>>
    %392 = vector.broadcast %391 : f32 to vector<1x14x14xf32>
    %393 = arith.mulf %392, %382 : vector<1x14x14xf32>
    %394 = arith.addf %368, %393 : vector<1x14x14xf32>
    %c103 = arith.constant 103 : index
    %395 = memref.load %arg1[%c103] : memref<162xf32, #tpu.memory_space<smem>>
    %396 = vector.broadcast %395 : f32 to vector<1x14x14xf32>
    %397 = arith.mulf %396, %382 : vector<1x14x14xf32>
    %398 = arith.addf %372, %397 : vector<1x14x14xf32>
    %c130 = arith.constant 130 : index
    %399 = memref.load %arg1[%c130] : memref<162xf32, #tpu.memory_space<smem>>
    %400 = vector.broadcast %399 : f32 to vector<1x14x14xf32>
    %401 = arith.mulf %400, %382 : vector<1x14x14xf32>
    %402 = arith.addf %376, %401 : vector<1x14x14xf32>
    %c157 = arith.constant 157 : index
    %403 = memref.load %arg1[%c157] : memref<162xf32, #tpu.memory_space<smem>>
    %404 = vector.broadcast %403 : f32 to vector<1x14x14xf32>
    %405 = arith.mulf %404, %382 : vector<1x14x14xf32>
    %406 = arith.addf %380, %405 : vector<1x14x14xf32>
    %c0_25 = arith.constant 0 : index
    %c0_26 = arith.constant 0 : index
    %c1_27 = arith.constant 1 : index
    %c2_28 = arith.constant 2 : index
    %407 = vector.load %arg3[%c0_25, %c0_26, %c1_27, %c2_28] : memref<1x3x16x16xf32, #tpu.memory_space<vmem>>, vector<1x3x14x14xf32>
    %408 = vector.extract_strided_slice %407 {offsets = [0, 0, 0, 0], sizes = [1, 1, 14, 14], strides = [1, 1, 1, 1]} : vector<1x3x14x14xf32> to vector<1x1x14x14xf32>
    %409 = vector.shape_cast %408 : vector<1x1x14x14xf32> to vector<1x14x14xf32>
    %c5_29 = arith.constant 5 : index
    %410 = memref.load %arg1[%c5_29] : memref<162xf32, #tpu.memory_space<smem>>
    %411 = vector.broadcast %410 : f32 to vector<1x14x14xf32>
    %412 = arith.mulf %411, %409 : vector<1x14x14xf32>
    %413 = arith.addf %386, %412 : vector<1x14x14xf32>
    %c32 = arith.constant 32 : index
    %414 = memref.load %arg1[%c32] : memref<162xf32, #tpu.memory_space<smem>>
    %415 = vector.broadcast %414 : f32 to vector<1x14x14xf32>
    %416 = arith.mulf %415, %409 : vector<1x14x14xf32>
    %417 = arith.addf %390, %416 : vector<1x14x14xf32>
    %c59 = arith.constant 59 : index
    %418 = memref.load %arg1[%c59] : memref<162xf32, #tpu.memory_space<smem>>
    %419 = vector.broadcast %418 : f32 to vector<1x14x14xf32>
    %420 = arith.mulf %419, %409 : vector<1x14x14xf32>
    %421 = arith.addf %394, %420 : vector<1x14x14xf32>
    %c86 = arith.constant 86 : index
    %422 = memref.load %arg1[%c86] : memref<162xf32, #tpu.memory_space<smem>>
    %423 = vector.broadcast %422 : f32 to vector<1x14x14xf32>
    %424 = arith.mulf %423, %409 : vector<1x14x14xf32>
    %425 = arith.addf %398, %424 : vector<1x14x14xf32>
    %c113 = arith.constant 113 : index
    %426 = memref.load %arg1[%c113] : memref<162xf32, #tpu.memory_space<smem>>
    %427 = vector.broadcast %426 : f32 to vector<1x14x14xf32>
    %428 = arith.mulf %427, %409 : vector<1x14x14xf32>
    %429 = arith.addf %402, %428 : vector<1x14x14xf32>
    %c140 = arith.constant 140 : index
    %430 = memref.load %arg1[%c140] : memref<162xf32, #tpu.memory_space<smem>>
    %431 = vector.broadcast %430 : f32 to vector<1x14x14xf32>
    %432 = arith.mulf %431, %409 : vector<1x14x14xf32>
    %433 = arith.addf %406, %432 : vector<1x14x14xf32>
    %434 = vector.extract_strided_slice %407 {offsets = [0, 1, 0, 0], sizes = [1, 1, 14, 14], strides = [1, 1, 1, 1]} : vector<1x3x14x14xf32> to vector<1x1x14x14xf32>
    %435 = vector.shape_cast %434 : vector<1x1x14x14xf32> to vector<1x14x14xf32>
    %c14 = arith.constant 14 : index
    %436 = memref.load %arg1[%c14] : memref<162xf32, #tpu.memory_space<smem>>
    %437 = vector.broadcast %436 : f32 to vector<1x14x14xf32>
    %438 = arith.mulf %437, %435 : vector<1x14x14xf32>
    %439 = arith.addf %413, %438 : vector<1x14x14xf32>
    %c41 = arith.constant 41 : index
    %440 = memref.load %arg1[%c41] : memref<162xf32, #tpu.memory_space<smem>>
    %441 = vector.broadcast %440 : f32 to vector<1x14x14xf32>
    %442 = arith.mulf %441, %435 : vector<1x14x14xf32>
    %443 = arith.addf %417, %442 : vector<1x14x14xf32>
    %c68 = arith.constant 68 : index
    %444 = memref.load %arg1[%c68] : memref<162xf32, #tpu.memory_space<smem>>
    %445 = vector.broadcast %444 : f32 to vector<1x14x14xf32>
    %446 = arith.mulf %445, %435 : vector<1x14x14xf32>
    %447 = arith.addf %421, %446 : vector<1x14x14xf32>
    %c95 = arith.constant 95 : index
    %448 = memref.load %arg1[%c95] : memref<162xf32, #tpu.memory_space<smem>>
    %449 = vector.broadcast %448 : f32 to vector<1x14x14xf32>
    %450 = arith.mulf %449, %435 : vector<1x14x14xf32>
    %451 = arith.addf %425, %450 : vector<1x14x14xf32>
    %c122 = arith.constant 122 : index
    %452 = memref.load %arg1[%c122] : memref<162xf32, #tpu.memory_space<smem>>
    %453 = vector.broadcast %452 : f32 to vector<1x14x14xf32>
    %454 = arith.mulf %453, %435 : vector<1x14x14xf32>
    %455 = arith.addf %429, %454 : vector<1x14x14xf32>
    %c149 = arith.constant 149 : index
    %456 = memref.load %arg1[%c149] : memref<162xf32, #tpu.memory_space<smem>>
    %457 = vector.broadcast %456 : f32 to vector<1x14x14xf32>
    %458 = arith.mulf %457, %435 : vector<1x14x14xf32>
    %459 = arith.addf %433, %458 : vector<1x14x14xf32>
    %460 = vector.extract_strided_slice %407 {offsets = [0, 2, 0, 0], sizes = [1, 1, 14, 14], strides = [1, 1, 1, 1]} : vector<1x3x14x14xf32> to vector<1x1x14x14xf32>
    %461 = vector.shape_cast %460 : vector<1x1x14x14xf32> to vector<1x14x14xf32>
    %c23 = arith.constant 23 : index
    %462 = memref.load %arg1[%c23] : memref<162xf32, #tpu.memory_space<smem>>
    %463 = vector.broadcast %462 : f32 to vector<1x14x14xf32>
    %464 = arith.mulf %463, %461 : vector<1x14x14xf32>
    %465 = arith.addf %439, %464 : vector<1x14x14xf32>
    %c50 = arith.constant 50 : index
    %466 = memref.load %arg1[%c50] : memref<162xf32, #tpu.memory_space<smem>>
    %467 = vector.broadcast %466 : f32 to vector<1x14x14xf32>
    %468 = arith.mulf %467, %461 : vector<1x14x14xf32>
    %469 = arith.addf %443, %468 : vector<1x14x14xf32>
    %c77 = arith.constant 77 : index
    %470 = memref.load %arg1[%c77] : memref<162xf32, #tpu.memory_space<smem>>
    %471 = vector.broadcast %470 : f32 to vector<1x14x14xf32>
    %472 = arith.mulf %471, %461 : vector<1x14x14xf32>
    %473 = arith.addf %447, %472 : vector<1x14x14xf32>
    %c104 = arith.constant 104 : index
    %474 = memref.load %arg1[%c104] : memref<162xf32, #tpu.memory_space<smem>>
    %475 = vector.broadcast %474 : f32 to vector<1x14x14xf32>
    %476 = arith.mulf %475, %461 : vector<1x14x14xf32>
    %477 = arith.addf %451, %476 : vector<1x14x14xf32>
    %c131 = arith.constant 131 : index
    %478 = memref.load %arg1[%c131] : memref<162xf32, #tpu.memory_space<smem>>
    %479 = vector.broadcast %478 : f32 to vector<1x14x14xf32>
    %480 = arith.mulf %479, %461 : vector<1x14x14xf32>
    %481 = arith.addf %455, %480 : vector<1x14x14xf32>
    %c158 = arith.constant 158 : index
    %482 = memref.load %arg1[%c158] : memref<162xf32, #tpu.memory_space<smem>>
    %483 = vector.broadcast %482 : f32 to vector<1x14x14xf32>
    %484 = arith.mulf %483, %461 : vector<1x14x14xf32>
    %485 = arith.addf %459, %484 : vector<1x14x14xf32>
    %c0_30 = arith.constant 0 : index
    %c0_31 = arith.constant 0 : index
    %c2_32 = arith.constant 2 : index
    %c0_33 = arith.constant 0 : index
    %486 = vector.load %arg3[%c0_30, %c0_31, %c2_32, %c0_33] : memref<1x3x16x16xf32, #tpu.memory_space<vmem>>, vector<1x3x14x14xf32>
    %487 = vector.extract_strided_slice %486 {offsets = [0, 0, 0, 0], sizes = [1, 1, 14, 14], strides = [1, 1, 1, 1]} : vector<1x3x14x14xf32> to vector<1x1x14x14xf32>
    %488 = vector.shape_cast %487 : vector<1x1x14x14xf32> to vector<1x14x14xf32>
    %c6 = arith.constant 6 : index
    %489 = memref.load %arg1[%c6] : memref<162xf32, #tpu.memory_space<smem>>
    %490 = vector.broadcast %489 : f32 to vector<1x14x14xf32>
    %491 = arith.mulf %490, %488 : vector<1x14x14xf32>
    %492 = arith.addf %465, %491 : vector<1x14x14xf32>
    %c33 = arith.constant 33 : index
    %493 = memref.load %arg1[%c33] : memref<162xf32, #tpu.memory_space<smem>>
    %494 = vector.broadcast %493 : f32 to vector<1x14x14xf32>
    %495 = arith.mulf %494, %488 : vector<1x14x14xf32>
    %496 = arith.addf %469, %495 : vector<1x14x14xf32>
    %c60 = arith.constant 60 : index
    %497 = memref.load %arg1[%c60] : memref<162xf32, #tpu.memory_space<smem>>
    %498 = vector.broadcast %497 : f32 to vector<1x14x14xf32>
    %499 = arith.mulf %498, %488 : vector<1x14x14xf32>
    %500 = arith.addf %473, %499 : vector<1x14x14xf32>
    %c87 = arith.constant 87 : index
    %501 = memref.load %arg1[%c87] : memref<162xf32, #tpu.memory_space<smem>>
    %502 = vector.broadcast %501 : f32 to vector<1x14x14xf32>
    %503 = arith.mulf %502, %488 : vector<1x14x14xf32>
    %504 = arith.addf %477, %503 : vector<1x14x14xf32>
    %c114 = arith.constant 114 : index
    %505 = memref.load %arg1[%c114] : memref<162xf32, #tpu.memory_space<smem>>
    %506 = vector.broadcast %505 : f32 to vector<1x14x14xf32>
    %507 = arith.mulf %506, %488 : vector<1x14x14xf32>
    %508 = arith.addf %481, %507 : vector<1x14x14xf32>
    %c141 = arith.constant 141 : index
    %509 = memref.load %arg1[%c141] : memref<162xf32, #tpu.memory_space<smem>>
    %510 = vector.broadcast %509 : f32 to vector<1x14x14xf32>
    %511 = arith.mulf %510, %488 : vector<1x14x14xf32>
    %512 = arith.addf %485, %511 : vector<1x14x14xf32>
    %513 = vector.extract_strided_slice %486 {offsets = [0, 1, 0, 0], sizes = [1, 1, 14, 14], strides = [1, 1, 1, 1]} : vector<1x3x14x14xf32> to vector<1x1x14x14xf32>
    %514 = vector.shape_cast %513 : vector<1x1x14x14xf32> to vector<1x14x14xf32>
    %c15 = arith.constant 15 : index
    %515 = memref.load %arg1[%c15] : memref<162xf32, #tpu.memory_space<smem>>
    %516 = vector.broadcast %515 : f32 to vector<1x14x14xf32>
    %517 = arith.mulf %516, %514 : vector<1x14x14xf32>
    %518 = arith.addf %492, %517 : vector<1x14x14xf32>
    %c42 = arith.constant 42 : index
    %519 = memref.load %arg1[%c42] : memref<162xf32, #tpu.memory_space<smem>>
    %520 = vector.broadcast %519 : f32 to vector<1x14x14xf32>
    %521 = arith.mulf %520, %514 : vector<1x14x14xf32>
    %522 = arith.addf %496, %521 : vector<1x14x14xf32>
    %c69 = arith.constant 69 : index
    %523 = memref.load %arg1[%c69] : memref<162xf32, #tpu.memory_space<smem>>
    %524 = vector.broadcast %523 : f32 to vector<1x14x14xf32>
    %525 = arith.mulf %524, %514 : vector<1x14x14xf32>
    %526 = arith.addf %500, %525 : vector<1x14x14xf32>
    %c96 = arith.constant 96 : index
    %527 = memref.load %arg1[%c96] : memref<162xf32, #tpu.memory_space<smem>>
    %528 = vector.broadcast %527 : f32 to vector<1x14x14xf32>
    %529 = arith.mulf %528, %514 : vector<1x14x14xf32>
    %530 = arith.addf %504, %529 : vector<1x14x14xf32>
    %c123 = arith.constant 123 : index
    %531 = memref.load %arg1[%c123] : memref<162xf32, #tpu.memory_space<smem>>
    %532 = vector.broadcast %531 : f32 to vector<1x14x14xf32>
    %533 = arith.mulf %532, %514 : vector<1x14x14xf32>
    %534 = arith.addf %508, %533 : vector<1x14x14xf32>
    %c150 = arith.constant 150 : index
    %535 = memref.load %arg1[%c150] : memref<162xf32, #tpu.memory_space<smem>>
    %536 = vector.broadcast %535 : f32 to vector<1x14x14xf32>
    %537 = arith.mulf %536, %514 : vector<1x14x14xf32>
    %538 = arith.addf %512, %537 : vector<1x14x14xf32>
    %539 = vector.extract_strided_slice %486 {offsets = [0, 2, 0, 0], sizes = [1, 1, 14, 14], strides = [1, 1, 1, 1]} : vector<1x3x14x14xf32> to vector<1x1x14x14xf32>
    %540 = vector.shape_cast %539 : vector<1x1x14x14xf32> to vector<1x14x14xf32>
    %c24 = arith.constant 24 : index
    %541 = memref.load %arg1[%c24] : memref<162xf32, #tpu.memory_space<smem>>
    %542 = vector.broadcast %541 : f32 to vector<1x14x14xf32>
    %543 = arith.mulf %542, %540 : vector<1x14x14xf32>
    %544 = arith.addf %518, %543 : vector<1x14x14xf32>
    %c51 = arith.constant 51 : index
    %545 = memref.load %arg1[%c51] : memref<162xf32, #tpu.memory_space<smem>>
    %546 = vector.broadcast %545 : f32 to vector<1x14x14xf32>
    %547 = arith.mulf %546, %540 : vector<1x14x14xf32>
    %548 = arith.addf %522, %547 : vector<1x14x14xf32>
    %c78 = arith.constant 78 : index
    %549 = memref.load %arg1[%c78] : memref<162xf32, #tpu.memory_space<smem>>
    %550 = vector.broadcast %549 : f32 to vector<1x14x14xf32>
    %551 = arith.mulf %550, %540 : vector<1x14x14xf32>
    %552 = arith.addf %526, %551 : vector<1x14x14xf32>
    %c105 = arith.constant 105 : index
    %553 = memref.load %arg1[%c105] : memref<162xf32, #tpu.memory_space<smem>>
    %554 = vector.broadcast %553 : f32 to vector<1x14x14xf32>
    %555 = arith.mulf %554, %540 : vector<1x14x14xf32>
    %556 = arith.addf %530, %555 : vector<1x14x14xf32>
    %c132 = arith.constant 132 : index
    %557 = memref.load %arg1[%c132] : memref<162xf32, #tpu.memory_space<smem>>
    %558 = vector.broadcast %557 : f32 to vector<1x14x14xf32>
    %559 = arith.mulf %558, %540 : vector<1x14x14xf32>
    %560 = arith.addf %534, %559 : vector<1x14x14xf32>
    %c159 = arith.constant 159 : index
    %561 = memref.load %arg1[%c159] : memref<162xf32, #tpu.memory_space<smem>>
    %562 = vector.broadcast %561 : f32 to vector<1x14x14xf32>
    %563 = arith.mulf %562, %540 : vector<1x14x14xf32>
    %564 = arith.addf %538, %563 : vector<1x14x14xf32>
    %c0_34 = arith.constant 0 : index
    %c0_35 = arith.constant 0 : index
    %c2_36 = arith.constant 2 : index
    %c1_37 = arith.constant 1 : index
    %565 = vector.load %arg3[%c0_34, %c0_35, %c2_36, %c1_37] : memref<1x3x16x16xf32, #tpu.memory_space<vmem>>, vector<1x3x14x14xf32>
    %566 = vector.extract_strided_slice %565 {offsets = [0, 0, 0, 0], sizes = [1, 1, 14, 14], strides = [1, 1, 1, 1]} : vector<1x3x14x14xf32> to vector<1x1x14x14xf32>
    %567 = vector.shape_cast %566 : vector<1x1x14x14xf32> to vector<1x14x14xf32>
    %c7 = arith.constant 7 : index
    %568 = memref.load %arg1[%c7] : memref<162xf32, #tpu.memory_space<smem>>
    %569 = vector.broadcast %568 : f32 to vector<1x14x14xf32>
    %570 = arith.mulf %569, %567 : vector<1x14x14xf32>
    %571 = arith.addf %544, %570 : vector<1x14x14xf32>
    %c34 = arith.constant 34 : index
    %572 = memref.load %arg1[%c34] : memref<162xf32, #tpu.memory_space<smem>>
    %573 = vector.broadcast %572 : f32 to vector<1x14x14xf32>
    %574 = arith.mulf %573, %567 : vector<1x14x14xf32>
    %575 = arith.addf %548, %574 : vector<1x14x14xf32>
    %c61 = arith.constant 61 : index
    %576 = memref.load %arg1[%c61] : memref<162xf32, #tpu.memory_space<smem>>
    %577 = vector.broadcast %576 : f32 to vector<1x14x14xf32>
    %578 = arith.mulf %577, %567 : vector<1x14x14xf32>
    %579 = arith.addf %552, %578 : vector<1x14x14xf32>
    %c88 = arith.constant 88 : index
    %580 = memref.load %arg1[%c88] : memref<162xf32, #tpu.memory_space<smem>>
    %581 = vector.broadcast %580 : f32 to vector<1x14x14xf32>
    %582 = arith.mulf %581, %567 : vector<1x14x14xf32>
    %583 = arith.addf %556, %582 : vector<1x14x14xf32>
    %c115 = arith.constant 115 : index
    %584 = memref.load %arg1[%c115] : memref<162xf32, #tpu.memory_space<smem>>
    %585 = vector.broadcast %584 : f32 to vector<1x14x14xf32>
    %586 = arith.mulf %585, %567 : vector<1x14x14xf32>
    %587 = arith.addf %560, %586 : vector<1x14x14xf32>
    %c142 = arith.constant 142 : index
    %588 = memref.load %arg1[%c142] : memref<162xf32, #tpu.memory_space<smem>>
    %589 = vector.broadcast %588 : f32 to vector<1x14x14xf32>
    %590 = arith.mulf %589, %567 : vector<1x14x14xf32>
    %591 = arith.addf %564, %590 : vector<1x14x14xf32>
    %592 = vector.extract_strided_slice %565 {offsets = [0, 1, 0, 0], sizes = [1, 1, 14, 14], strides = [1, 1, 1, 1]} : vector<1x3x14x14xf32> to vector<1x1x14x14xf32>
    %593 = vector.shape_cast %592 : vector<1x1x14x14xf32> to vector<1x14x14xf32>
    %c16 = arith.constant 16 : index
    %594 = memref.load %arg1[%c16] : memref<162xf32, #tpu.memory_space<smem>>
    %595 = vector.broadcast %594 : f32 to vector<1x14x14xf32>
    %596 = arith.mulf %595, %593 : vector<1x14x14xf32>
    %597 = arith.addf %571, %596 : vector<1x14x14xf32>
    %c43 = arith.constant 43 : index
    %598 = memref.load %arg1[%c43] : memref<162xf32, #tpu.memory_space<smem>>
    %599 = vector.broadcast %598 : f32 to vector<1x14x14xf32>
    %600 = arith.mulf %599, %593 : vector<1x14x14xf32>
    %601 = arith.addf %575, %600 : vector<1x14x14xf32>
    %c70 = arith.constant 70 : index
    %602 = memref.load %arg1[%c70] : memref<162xf32, #tpu.memory_space<smem>>
    %603 = vector.broadcast %602 : f32 to vector<1x14x14xf32>
    %604 = arith.mulf %603, %593 : vector<1x14x14xf32>
    %605 = arith.addf %579, %604 : vector<1x14x14xf32>
    %c97 = arith.constant 97 : index
    %606 = memref.load %arg1[%c97] : memref<162xf32, #tpu.memory_space<smem>>
    %607 = vector.broadcast %606 : f32 to vector<1x14x14xf32>
    %608 = arith.mulf %607, %593 : vector<1x14x14xf32>
    %609 = arith.addf %583, %608 : vector<1x14x14xf32>
    %c124 = arith.constant 124 : index
    %610 = memref.load %arg1[%c124] : memref<162xf32, #tpu.memory_space<smem>>
    %611 = vector.broadcast %610 : f32 to vector<1x14x14xf32>
    %612 = arith.mulf %611, %593 : vector<1x14x14xf32>
    %613 = arith.addf %587, %612 : vector<1x14x14xf32>
    %c151 = arith.constant 151 : index
    %614 = memref.load %arg1[%c151] : memref<162xf32, #tpu.memory_space<smem>>
    %615 = vector.broadcast %614 : f32 to vector<1x14x14xf32>
    %616 = arith.mulf %615, %593 : vector<1x14x14xf32>
    %617 = arith.addf %591, %616 : vector<1x14x14xf32>
    %618 = vector.extract_strided_slice %565 {offsets = [0, 2, 0, 0], sizes = [1, 1, 14, 14], strides = [1, 1, 1, 1]} : vector<1x3x14x14xf32> to vector<1x1x14x14xf32>
    %619 = vector.shape_cast %618 : vector<1x1x14x14xf32> to vector<1x14x14xf32>
    %c25 = arith.constant 25 : index
    %620 = memref.load %arg1[%c25] : memref<162xf32, #tpu.memory_space<smem>>
    %621 = vector.broadcast %620 : f32 to vector<1x14x14xf32>
    %622 = arith.mulf %621, %619 : vector<1x14x14xf32>
    %623 = arith.addf %597, %622 : vector<1x14x14xf32>
    %c52 = arith.constant 52 : index
    %624 = memref.load %arg1[%c52] : memref<162xf32, #tpu.memory_space<smem>>
    %625 = vector.broadcast %624 : f32 to vector<1x14x14xf32>
    %626 = arith.mulf %625, %619 : vector<1x14x14xf32>
    %627 = arith.addf %601, %626 : vector<1x14x14xf32>
    %c79 = arith.constant 79 : index
    %628 = memref.load %arg1[%c79] : memref<162xf32, #tpu.memory_space<smem>>
    %629 = vector.broadcast %628 : f32 to vector<1x14x14xf32>
    %630 = arith.mulf %629, %619 : vector<1x14x14xf32>
    %631 = arith.addf %605, %630 : vector<1x14x14xf32>
    %c106 = arith.constant 106 : index
    %632 = memref.load %arg1[%c106] : memref<162xf32, #tpu.memory_space<smem>>
    %633 = vector.broadcast %632 : f32 to vector<1x14x14xf32>
    %634 = arith.mulf %633, %619 : vector<1x14x14xf32>
    %635 = arith.addf %609, %634 : vector<1x14x14xf32>
    %c133 = arith.constant 133 : index
    %636 = memref.load %arg1[%c133] : memref<162xf32, #tpu.memory_space<smem>>
    %637 = vector.broadcast %636 : f32 to vector<1x14x14xf32>
    %638 = arith.mulf %637, %619 : vector<1x14x14xf32>
    %639 = arith.addf %613, %638 : vector<1x14x14xf32>
    %c160 = arith.constant 160 : index
    %640 = memref.load %arg1[%c160] : memref<162xf32, #tpu.memory_space<smem>>
    %641 = vector.broadcast %640 : f32 to vector<1x14x14xf32>
    %642 = arith.mulf %641, %619 : vector<1x14x14xf32>
    %643 = arith.addf %617, %642 : vector<1x14x14xf32>
    %c0_38 = arith.constant 0 : index
    %c0_39 = arith.constant 0 : index
    %c2_40 = arith.constant 2 : index
    %c2_41 = arith.constant 2 : index
    %644 = vector.load %arg3[%c0_38, %c0_39, %c2_40, %c2_41] : memref<1x3x16x16xf32, #tpu.memory_space<vmem>>, vector<1x3x14x14xf32>
    %645 = vector.extract_strided_slice %644 {offsets = [0, 0, 0, 0], sizes = [1, 1, 14, 14], strides = [1, 1, 1, 1]} : vector<1x3x14x14xf32> to vector<1x1x14x14xf32>
    %646 = vector.shape_cast %645 : vector<1x1x14x14xf32> to vector<1x14x14xf32>
    %c8 = arith.constant 8 : index
    %647 = memref.load %arg1[%c8] : memref<162xf32, #tpu.memory_space<smem>>
    %648 = vector.broadcast %647 : f32 to vector<1x14x14xf32>
    %649 = arith.mulf %648, %646 : vector<1x14x14xf32>
    %650 = arith.addf %623, %649 : vector<1x14x14xf32>
    %c35 = arith.constant 35 : index
    %651 = memref.load %arg1[%c35] : memref<162xf32, #tpu.memory_space<smem>>
    %652 = vector.broadcast %651 : f32 to vector<1x14x14xf32>
    %653 = arith.mulf %652, %646 : vector<1x14x14xf32>
    %654 = arith.addf %627, %653 : vector<1x14x14xf32>
    %c62 = arith.constant 62 : index
    %655 = memref.load %arg1[%c62] : memref<162xf32, #tpu.memory_space<smem>>
    %656 = vector.broadcast %655 : f32 to vector<1x14x14xf32>
    %657 = arith.mulf %656, %646 : vector<1x14x14xf32>
    %658 = arith.addf %631, %657 : vector<1x14x14xf32>
    %c89 = arith.constant 89 : index
    %659 = memref.load %arg1[%c89] : memref<162xf32, #tpu.memory_space<smem>>
    %660 = vector.broadcast %659 : f32 to vector<1x14x14xf32>
    %661 = arith.mulf %660, %646 : vector<1x14x14xf32>
    %662 = arith.addf %635, %661 : vector<1x14x14xf32>
    %c116 = arith.constant 116 : index
    %663 = memref.load %arg1[%c116] : memref<162xf32, #tpu.memory_space<smem>>
    %664 = vector.broadcast %663 : f32 to vector<1x14x14xf32>
    %665 = arith.mulf %664, %646 : vector<1x14x14xf32>
    %666 = arith.addf %639, %665 : vector<1x14x14xf32>
    %c143 = arith.constant 143 : index
    %667 = memref.load %arg1[%c143] : memref<162xf32, #tpu.memory_space<smem>>
    %668 = vector.broadcast %667 : f32 to vector<1x14x14xf32>
    %669 = arith.mulf %668, %646 : vector<1x14x14xf32>
    %670 = arith.addf %643, %669 : vector<1x14x14xf32>
    %671 = vector.extract_strided_slice %644 {offsets = [0, 1, 0, 0], sizes = [1, 1, 14, 14], strides = [1, 1, 1, 1]} : vector<1x3x14x14xf32> to vector<1x1x14x14xf32>
    %672 = vector.shape_cast %671 : vector<1x1x14x14xf32> to vector<1x14x14xf32>
    %c17 = arith.constant 17 : index
    %673 = memref.load %arg1[%c17] : memref<162xf32, #tpu.memory_space<smem>>
    %674 = vector.broadcast %673 : f32 to vector<1x14x14xf32>
    %675 = arith.mulf %674, %672 : vector<1x14x14xf32>
    %676 = arith.addf %650, %675 : vector<1x14x14xf32>
    %c44 = arith.constant 44 : index
    %677 = memref.load %arg1[%c44] : memref<162xf32, #tpu.memory_space<smem>>
    %678 = vector.broadcast %677 : f32 to vector<1x14x14xf32>
    %679 = arith.mulf %678, %672 : vector<1x14x14xf32>
    %680 = arith.addf %654, %679 : vector<1x14x14xf32>
    %c71 = arith.constant 71 : index
    %681 = memref.load %arg1[%c71] : memref<162xf32, #tpu.memory_space<smem>>
    %682 = vector.broadcast %681 : f32 to vector<1x14x14xf32>
    %683 = arith.mulf %682, %672 : vector<1x14x14xf32>
    %684 = arith.addf %658, %683 : vector<1x14x14xf32>
    %c98 = arith.constant 98 : index
    %685 = memref.load %arg1[%c98] : memref<162xf32, #tpu.memory_space<smem>>
    %686 = vector.broadcast %685 : f32 to vector<1x14x14xf32>
    %687 = arith.mulf %686, %672 : vector<1x14x14xf32>
    %688 = arith.addf %662, %687 : vector<1x14x14xf32>
    %c125 = arith.constant 125 : index
    %689 = memref.load %arg1[%c125] : memref<162xf32, #tpu.memory_space<smem>>
    %690 = vector.broadcast %689 : f32 to vector<1x14x14xf32>
    %691 = arith.mulf %690, %672 : vector<1x14x14xf32>
    %692 = arith.addf %666, %691 : vector<1x14x14xf32>
    %c152 = arith.constant 152 : index
    %693 = memref.load %arg1[%c152] : memref<162xf32, #tpu.memory_space<smem>>
    %694 = vector.broadcast %693 : f32 to vector<1x14x14xf32>
    %695 = arith.mulf %694, %672 : vector<1x14x14xf32>
    %696 = arith.addf %670, %695 : vector<1x14x14xf32>
    %697 = vector.extract_strided_slice %644 {offsets = [0, 2, 0, 0], sizes = [1, 1, 14, 14], strides = [1, 1, 1, 1]} : vector<1x3x14x14xf32> to vector<1x1x14x14xf32>
    %698 = vector.shape_cast %697 : vector<1x1x14x14xf32> to vector<1x14x14xf32>
    %c26 = arith.constant 26 : index
    %699 = memref.load %arg1[%c26] : memref<162xf32, #tpu.memory_space<smem>>
    %700 = vector.broadcast %699 : f32 to vector<1x14x14xf32>
    %701 = arith.mulf %700, %698 : vector<1x14x14xf32>
    %702 = arith.addf %676, %701 : vector<1x14x14xf32>
    %c53 = arith.constant 53 : index
    %703 = memref.load %arg1[%c53] : memref<162xf32, #tpu.memory_space<smem>>
    %704 = vector.broadcast %703 : f32 to vector<1x14x14xf32>
    %705 = arith.mulf %704, %698 : vector<1x14x14xf32>
    %706 = arith.addf %680, %705 : vector<1x14x14xf32>
    %c80 = arith.constant 80 : index
    %707 = memref.load %arg1[%c80] : memref<162xf32, #tpu.memory_space<smem>>
    %708 = vector.broadcast %707 : f32 to vector<1x14x14xf32>
    %709 = arith.mulf %708, %698 : vector<1x14x14xf32>
    %710 = arith.addf %684, %709 : vector<1x14x14xf32>
    %c107 = arith.constant 107 : index
    %711 = memref.load %arg1[%c107] : memref<162xf32, #tpu.memory_space<smem>>
    %712 = vector.broadcast %711 : f32 to vector<1x14x14xf32>
    %713 = arith.mulf %712, %698 : vector<1x14x14xf32>
    %714 = arith.addf %688, %713 : vector<1x14x14xf32>
    %c134 = arith.constant 134 : index
    %715 = memref.load %arg1[%c134] : memref<162xf32, #tpu.memory_space<smem>>
    %716 = vector.broadcast %715 : f32 to vector<1x14x14xf32>
    %717 = arith.mulf %716, %698 : vector<1x14x14xf32>
    %718 = arith.addf %692, %717 : vector<1x14x14xf32>
    %c161 = arith.constant 161 : index
    %719 = memref.load %arg1[%c161] : memref<162xf32, #tpu.memory_space<smem>>
    %720 = vector.broadcast %719 : f32 to vector<1x14x14xf32>
    %721 = arith.mulf %720, %698 : vector<1x14x14xf32>
    %722 = arith.addf %696, %721 : vector<1x14x14xf32>
    %723 = vector.shape_cast %702 : vector<1x14x14xf32> to vector<1x1x14x14xf32>
    %724 = vector.shape_cast %706 : vector<1x14x14xf32> to vector<1x1x14x14xf32>
    %725 = vector.shape_cast %710 : vector<1x14x14xf32> to vector<1x1x14x14xf32>
    %726 = vector.shape_cast %714 : vector<1x14x14xf32> to vector<1x1x14x14xf32>
    %727 = vector.shape_cast %718 : vector<1x14x14xf32> to vector<1x1x14x14xf32>
    %728 = vector.shape_cast %722 : vector<1x14x14xf32> to vector<1x1x14x14xf32>
    %729 = tpu.concatenate %723, %724, %725, %726, %727, %728 in 1 : vector<1x1x14x14xf32>, vector<1x1x14x14xf32>, vector<1x1x14x14xf32>, vector<1x1x14x14xf32>, vector<1x1x14x14xf32>, vector<1x1x14x14xf32> -> vector<1x6x14x14xf32>
    %c0_42 = arith.constant 0 : index
    %c0_43 = arith.constant 0 : index
    %c0_44 = arith.constant 0 : index
    %c0_45 = arith.constant 0 : index
    %730 = vector.load %arg4[%c0_42, %c0_43, %c0_44, %c0_45] : memref<1x6x14x14xf32, #tpu.memory_space<vmem>>, vector<1x6x14x14xf32>
    tpu.vector_store %arg4[%c0_42, %c0_43, %c0_44, %c0_45], %729 {strides = array<i32>} : memref<1x6x14x14xf32, #tpu.memory_space<vmem>>, vector<1x6x14x14xf32>,
    return
  }
  func.func @transform_0(%arg0: i32) -> i32 {
    %c0_i32 = arith.constant 0 : i32
    %c0_i32_0 = arith.constant 0 : i32
    return %c0_i32 : i32
  }
  func.func @transform_1(%arg0: i32) -> i32 {
    %c0_i32 = arith.constant 0 : i32
    %c0_i32_0 = arith.constant 0 : i32
    return %c0_i32 : i32
  }
  func.func @transform_2(%arg0: i32) -> (i32, i32, i32, i32) {
    %c0_i32 = arith.constant 0 : i32
    %c0_i32_0 = arith.constant 0 : i32
    %c0_i32_1 = arith.constant 0 : i32
    %c0_i32_2 = arith.constant 0 : i32
    return %arg0, %c0_i32, %c0_i32_0, %c0_i32_1 : i32, i32, i32, i32
  }
  func.func @transform_3(%arg0: i32) -> (i32, i32, i32, i32) {
    %c0_i32 = arith.constant 0 : i32
    %c0_i32_0 = arith.constant 0 : i32
    %c0_i32_1 = arith.constant 0 : i32
    %c0_i32_2 = arith.constant 0 : i32
    return %arg0, %c0_i32, %c0_i32_0, %c0_i32_1 : i32, i32, i32, i32
  }
}

</mosaic_0001>

<llo_original>
// kernel: tpu_custom_call.1
$region0: #{tpu_custom_call.1}
  #allocation0 [shape = 'u32[]', space=smem, size = 0x4, offset = 0x4, fixed_abs, tag = 'smem constant byte address 0x4 - core index']
  #allocation1 [shape = 'u32[144,128]{1,0:T(1,128)}', space=vmem, size = 0x12000, scoped, tag = 'internal scratch']
  %s0 = inlined_call_operand.hbm [shape: f32[162], index: 0, kind: input, shape index: {}]
  %s1 = inlined_call_operand.vmem [shape: f32[6], index: 1, kind: input, shape index: {}]
  %s2 = inlined_call_operand.hbm [shape: f32[2,3,16,16], index: 2, kind: input, shape index: {}]
  %s3 = inlined_call_operand.vmem [shape: f32[2,6,14,14], index: 3, kind: output, shape index: {}]
  %s4 = sld [smem:[#allocation0]]
  $region57: #{tpu_custom_call.1} parent=0
    _
  %s6 = ssub.s32 1, %s4
  %s7 = scalar_select 0, %s6, %s4
  $region1: #{tpu_custom_call.1} parent=0
    #allocation2 [shape = 'u8[1024]{0}', space=smem, size = 0x400, scoped, tag = 'input window, operand 0, single buffered']
    #allocation3 [shape = 's32[2]{0}', space=sflag, size = 0x8, scoped, tag = 'scoped memory for tpu_custom_call.1']
    #allocation4 [shape = 's32[2]{0}', space=sflag, size = 0x8, scoped, tag = 'scoped memory for tpu_custom_call.1']
    #allocation5 [shape = 's32[2]{0}', space=sflag, size = 0x8, scoped, tag = 'scoped memory for tpu_custom_call.1']
    #allocation6 [shape = 'u8[512]{0}', space=smem, size = 0x200, scoped, tag = 'input window, operand 1, single buffered']
    #allocation7 [shape = 'u8[49152]{0}', space=vmem, size = 0xc000, scoped, tag = 'input window, operand 2']
    %8 = vsyncpa [#allocation4], 0
    %9 = vsyncpa [#allocation5], 0
    %10 = vsyncpa [#allocation3], 0
    %s11 = scalar_lea.sflag [#allocation3], 1
    %12 = vsyncpa %s11, 0
    loop: start=0, step=1, limit=4
    $region2: #{tpu_custom_call.1} parent=1 // loop_pre_header
      _
    $region3: #{tpu_custom_call.1} parent=1 // loop_header
      %s14 = sphi 0, %s18
      %p15 = scmp.ge.s32.totalorder %s14, 4
      %s22 = sphi 0, %s22
      %s24 = sphi 0, %s22
      %s25 = sphi 0, %s24
      %s39 = sphi 0, %s25
      %s43 = sphi 0, %s43
      %s45 = sphi 0, %s43
      %s46 = sphi 0, %s45
      %s60 = sphi 0, %s46
      %s66 = sphi 0, %s68
      %s69 = sphi 0, %s66
      %s70 = sphi 0, %s69
      %s86 = sphi 0, %s70
      %s92 = sphi 0, %s94
      %s95 = sphi 0, %s92
      %s96 = sphi 0, %s95
      %s112 = sphi 0, %s96
    $region4: #{tpu_custom_call.1} parent=1 // loop_header_branch
      %17 = sbr.rel (%p15) target = $region8
    $region5: #{tpu_custom_call.1} parent=1 // loop_body
      %s19 = ssub.s32 %s14, 1
      %s20 = ssub.s32 %s14, 2
      %s21 = sadd.s32 %s14, 1
      %s23 = sadd.s32 %s22, 1
      %p26 = scmp.eq.s32.totalorder %s14, 1
      %p27 = scmp.ne.s32.totalorder %s22, %s24
      %p28 = scmp.eq.s32.totalorder %s14, 0
      %p29 = por %p27, %p28
      %p30 = scmp.ne.s32.totalorder %s22, %s24
      %p31 = scmp.eq.s32.totalorder %s19, 1
      %p32 = por %p30, %p31
      %p33 = scmp.ne.s32.totalorder %s24, %s25
      %p34 = scmp.eq.s32.totalorder %s19, 0
      %p35 = por %p33, %p34
      %p36 = scmp.ne.s32.totalorder %s24, %s25
      %p37 = scmp.eq.s32.totalorder %s20, 1
      %p38 = por %p36, %p37
      %p40 = scmp.ne.s32.totalorder %s25, %s39
      %p41 = scmp.eq.s32.totalorder %s20, 0
      %p42 = por %p40, %p41
      %s44 = sadd.s32 %s43, 1
      %p47 = scmp.eq.s32.totalorder %s14, 1
      %p48 = scmp.ne.s32.totalorder %s43, %s45
      %p49 = scmp.eq.s32.totalorder %s14, 0
      %p50 = por %p48, %p49
      %p51 = scmp.ne.s32.totalorder %s43, %s45
      %p52 = scmp.eq.s32.totalorder %s19, 1
      %p53 = por %p51, %p52
      %p54 = scmp.ne.s32.totalorder %s45, %s46
      %p55 = scmp.eq.s32.totalorder %s19, 0
      %p56 = por %p54, %p55
      %p57 = scmp.ne.s32.totalorder %s45, %s46
      %p58 = scmp.eq.s32.totalorder %s20, 1
      %p59 = por %p57, %p58
      %p61 = scmp.ne.s32.totalorder %s46, %s60
      %p62 = scmp.eq.s32.totalorder %s20, 0
      %p63 = por %p61, %p62
      %s64 = ssub.s32 %s14, %s21
      %p65 = scmp.eq.s32.totalorder %s64, 0
      %s67 = sadd.s32 %s66, 1
      %s68 = scalar_select %p65, %s66, %s67
      %p71 = pneg %p65
      %p72 = scmp.eq.s32.totalorder %s14, 1
      %p73 = por %p71, %p72
      %p74 = scmp.ne.s32.totalorder %s66, %s69
      %p75 = scmp.eq.s32.totalorder %s14, 0
      %p76 = por %p74, %p75
      %p77 = scmp.ne.s32.totalorder %s66, %s69
      %p78 = scmp.eq.s32.totalorder %s19, 1
      %p79 = por %p77, %p78
      %p80 = scmp.ne.s32.totalorder %s69, %s70
      %p81 = scmp.eq.s32.totalorder %s19, 0
      %p82 = por %p80, %p81
      %p83 = scmp.ne.s32.totalorder %s69, %s70
      %p84 = scmp.eq.s32.totalorder %s20, 1
      %p85 = por %p83, %p84
      %p87 = scmp.ne.s32.totalorder %s70, %s86
      %p88 = scmp.eq.s32.totalorder %s20, 0
      %p89 = por %p87, %p88
      %s90 = ssub.s32 %s14, %s21
      %p91 = scmp.eq.s32.totalorder %s90, 0
      %s93 = sadd.s32 %s92, 1
      %s94 = scalar_select %p91, %s92, %s93
      %p97 = pneg %p91
      %p98 = scmp.eq.s32.totalorder %s14, 1
      %p99 = por %p97, %p98
      %p100 = scmp.ne.s32.totalorder %s92, %s95
      %p101 = scmp.eq.s32.totalorder %s14, 0
      %p102 = por %p100, %p101
      %p103 = scmp.ne.s32.totalorder %s92, %s95
      %p104 = scmp.eq.s32.totalorder %s19, 1
      %p105 = por %p103, %p104
      %p106 = scmp.ne.s32.totalorder %s95, %s96
      %p107 = scmp.eq.s32.totalorder %s19, 0
      %p108 = por %p106, %p107
      %p109 = scmp.ne.s32.totalorder %s95, %s96
      %p110 = scmp.eq.s32.totalorder %s20, 1
      %p111 = por %p109, %p110
      %p113 = scmp.ne.s32.totalorder %s96, %s112
      %p114 = scmp.eq.s32.totalorder %s20, 0
      %p115 = por %p113, %p114
      %p116 = scmp.le.s32.totalorder 1, %s14
      %p117 = scmp.lt.s32.totalorder %s14, 3
      %p118 = pnand %p116, %p117
      %p119 = pneg %p118
      // Predicated region
      $region9: #{tpu_custom_call.1} parent=5 // pred_check
        _
      $region10: #{tpu_custom_call.1} parent=5 // pred_check_branch
        %121 = sbr.rel (%p118) target = $region12
      $region11: #{tpu_custom_call.1} parent=5 // pred_region
        %s122 = ssub.s32 %s14, 1
        // Predicated region
        $region13: #{tpu_custom_call.1} parent=11 // pred_check
          %p123 = pneg %p35
        $region14: #{tpu_custom_call.1} parent=11 // pred_check_branch
          %125 = sbr.rel (%p123) target = $region16
        $region15: #{tpu_custom_call.1} parent=11 // pred_region
          %s127 = ssub.s32 32, 32
          %128 = vsyncadd [#allocation4], %s127
          %131 = dma.hbm_to_smem %s0, 32, [#allocation2], [#allocation4]
        $region16: #{tpu_custom_call.1} parent=11 // pred_fallthru
          _
        // Predicated region
        $region17: #{tpu_custom_call.1} parent=11 // pred_check
          %p132 = pneg %p56
        $region18: #{tpu_custom_call.1} parent=11 // pred_check_branch
          %134 = sbr.rel (%p132) target = $region20
        $region19: #{tpu_custom_call.1} parent=11 // pred_region
          %s136 = ssub.s32 16, 16
          %137 = vsyncadd [#allocation5], %s136
          %s139 = sshll.u32 %s1, 4
          %s140 = int_to_ptr.vmem [resolvable:$true] %s139
          %142 = dma.vmem_to_smem %s140, 16, [#allocation6], [#allocation5]
        $region20: #{tpu_custom_call.1} parent=11 // pred_fallthru
          _
      $region12: #{tpu_custom_call.1} parent=5 // pred_fallthru
        _
      %p143 = scmp.lt.s32.totalorder %s14, 2
      // Predicated region
      $region21: #{tpu_custom_call.1} parent=5 // pred_check
        %p144 = pneg %p143
      $region22: #{tpu_custom_call.1} parent=5 // pred_check_branch
        %146 = sbr.rel (%p144) target = $region24
      $region23: #{tpu_custom_call.1} parent=5 // pred_region
        // Predicated region
        $region25: #{tpu_custom_call.1} parent=23 // pred_check
          %p147 = pneg %p76
        $region26: #{tpu_custom_call.1} parent=23 // pred_check_branch
          %149 = sbr.rel (%p147) target = $region28
        $region27: #{tpu_custom_call.1} parent=23 // pred_region
          %s150 = sand.u32 %s66, 1
          %s151 = scalar_lea.sflag [#allocation3], %s150
          %s152 = sand.u32 %s66, 1
          %s153 = smul.addr %s152, 48
          %s154 = scalar_lea.vmem [#allocation7], %s153
          %s156 = ssub.s32 768, 768
          %157 = vsyncadd %s151, %s156
          %s158 = smul.addr %s14, 6
          %s159 = smul.addr %s158, 128
          %s160 = scalar_lea.hbm %s2, %s159
          %s161 = sshll.u32 %s154, 4
          %s162 = int_to_ptr.vmem [resolvable:$true] %s161
          %167 = dma.hbm_to_vmem [thread:$0]  %s160, 768, %s162, %s151, 128, 128, 8
        $region28: #{tpu_custom_call.1} parent=23 // pred_fallthru
          _
      $region24: #{tpu_custom_call.1} parent=5 // pred_fallthru
        _
      %p168 = scmp.le.s32.totalorder 1, %s14
      %p169 = scmp.lt.s32.totalorder %s14, 3
      %p170 = pnand %p168, %p169
      %p171 = pneg %p170
      // Predicated region
      $region29: #{tpu_custom_call.1} parent=5 // pred_check
        _
      $region30: #{tpu_custom_call.1} parent=5 // pred_check_branch
        %173 = sbr.rel (%p170) target = $region32
      $region31: #{tpu_custom_call.1} parent=5 // pred_region
        %s174 = ssub.s32 %s14, 1
        // Predicated region
        $region33: #{tpu_custom_call.1} parent=31 // pred_check
          %p175 = pneg %p35
        $region34: #{tpu_custom_call.1} parent=31 // pred_check_branch
          %177 = sbr.rel (%p175) target = $region36
        $region35: #{tpu_custom_call.1} parent=31 // pred_region
          %178 = dma.done [#allocation4], 32
        $region36: #{tpu_custom_call.1} parent=31 // pred_fallthru
          _
        // Predicated region
        $region37: #{tpu_custom_call.1} parent=31 // pred_check
          %p179 = pneg %p56
        $region38: #{tpu_custom_call.1} parent=31 // pred_check_branch
          %181 = sbr.rel (%p179) target = $region40
        $region39: #{tpu_custom_call.1} parent=31 // pred_region
          %182 = dma.done [#allocation5], 16
        $region40: #{tpu_custom_call.1} parent=31 // pred_fallthru
          _
        %s183 = sand.u32 %s69, 1
        %s184 = scalar_lea.sflag [#allocation3], %s183
        %s185 = sand.u32 %s69, 1
        %s186 = smul.addr %s185, 48
        %s187 = scalar_lea.vmem [#allocation7], %s186
        // Predicated region
        $region41: #{tpu_custom_call.1} parent=31 // pred_check
          %p188 = pneg %p82
        $region42: #{tpu_custom_call.1} parent=31 // pred_check_branch
          %190 = sbr.rel (%p188) target = $region44
        $region43: #{tpu_custom_call.1} parent=31 // pred_region
          %191 = dma.done %s184, 768
        $region44: #{tpu_custom_call.1} parent=31 // pred_fallthru
          _
        %192 = sfence
        %p193 = pneg %p35
        %p194 = pneg %p32
        %p195 = pneg %p56
        %p196 = pneg %p53
        %s197 = sand.u32 %s69, 1
        %s198 = scalar_lea.sflag [#allocation3], %s197
        %s199 = sand.u32 %s69, 1
        %s200 = smul.addr %s199, 48
        %s201 = scalar_lea.vmem [#allocation7], %s200
        %p202 = pneg %p82
        %p203 = pneg %p79
        %p204 = pneg %p108
        %p205 = pneg %p105
        %p206 = scmp.lt.s32.totalorder %s19, 1
        %s207 = scalar_select %p206, %s19, 1
        %s208 = smul.addr %s207, 12
        %s209 = smul.addr %s208, 8
        %s210 = scalar_lea.vmem %s3, %s209
        %p211 = scmp.lt.s32.totalorder %s19, 1
        %s212 = scalar_select %p211, %s19, 1
        %s213 = smul.addr %s212, 12
        %s214 = smul.addr %s213, 8
        %s215 = scalar_lea.vmem %s3, %s214
        %s216 = sld [smem:[#allocation6]]
        %v217 = vstv %s216
        %s218 = sld [smem:[#allocation6 + $0x1]]
        %v219 = vstv %s218
        %s220 = sld [smem:[#allocation6 + $0x2]]
        %v221 = vstv %s220
        %s222 = sld [smem:[#allocation6 + $0x3]]
        %v223 = vstv %s222
        %s224 = sld [smem:[#allocation6 + $0x4]]
        %v225 = vstv %s224
        %s226 = sld [smem:[#allocation6 + $0x5]]
        %v227 = vstv %s226
        %v228 = vld [vmem:[%s187] sm:$0xff]
        %v229 = vld [vmem:[%s187 + $0x8] sm:$0x3f]
        %v230 = vld [vmem:[%s187 + $0x10] sm:$0xff]
        %v231 = vld [vmem:[%s187 + $0x18] sm:$0x3f]
        %v232 = vld [vmem:[%s187 + $0x20] sm:$0xff]
        %v233 = vld [vmem:[%s187 + $0x28] sm:$0x3f]
        %s234 = sld [smem:[#allocation2]]
        %v235 = vstv %s234
        %v236 = vmul.f32 %v235, %v228
        %v237 = vmul.f32 %v235, %v229
        %v238 = vadd.f32 %v217, %v236
        %v239 = vadd.f32 %v217, %v237
        %s240 = sld [smem:[#allocation2 + $0x1b]]
        %v241 = vstv %s240
        %v242 = vmul.f32 %v241, %v228
        %v243 = vmul.f32 %v241, %v229
        %v244 = vadd.f32 %v219, %v242
        %v245 = vadd.f32 %v219, %v243
        %s246 = sld [smem:[#allocation2 + $0x36]]
        %v247 = vstv %s246
        %v248 = vmul.f32 %v247, %v228
        %v249 = vmul.f32 %v247, %v229
        %v250 = vadd.f32 %v221, %v248
        %v251 = vadd.f32 %v221, %v249
        %s252 = sld [smem:[#allocation2 + $0x51]]
        %v253 = vstv %s252
        %v254 = vmul.f32 %v253, %v228
        %v255 = vmul.f32 %v253, %v229
        %v256 = vadd.f32 %v223, %v254
        %v257 = vadd.f32 %v223, %v255
        %s258 = sld [smem:[#allocation2 + $0x6c]]
        %v259 = vstv %s258
        %v260 = vmul.f32 %v259, %v228
        %v261 = vmul.f32 %v259, %v229
        %v262 = vadd.f32 %v225, %v260
        %v263 = vadd.f32 %v225, %v261
        %s264 = sld [smem:[#allocation2 + $0x87]]
        %v265 = vstv %s264
        %v266 = vmul.f32 %v265, %v228
        %v267 = vmul.f32 %v265, %v229
        %v268 = vadd.f32 %v227, %v266
        %v269 = vadd.f32 %v227, %v267
        %s270 = sld [smem:[#allocation2 + $0x9]]
        %v271 = vstv %s270
        %v272 = vmul.f32 %v271, %v230
        %v273 = vmul.f32 %v271, %v231
        %v274 = vadd.f32 %v238, %v272
        %v275 = vadd.f32 %v239, %v273
        %s276 = sld [smem:[#allocation2 + $0x24]]
        %v277 = vstv %s276
        %v278 = vmul.f32 %v277, %v230
        %v279 = vmul.f32 %v277, %v231
        %v280 = vadd.f32 %v244, %v278
        %v281 = vadd.f32 %v245, %v279
        %s282 = sld [smem:[#allocation2 + $0x3f]]
        %v283 = vstv %s282
        %v284 = vmul.f32 %v283, %v230
        %v285 = vmul.f32 %v283, %v231
        %v286 = vadd.f32 %v250, %v284
        %v287 = vadd.f32 %v251, %v285
        %s288 = sld [smem:[#allocation2 + $0x5a]]
        %v289 = vstv %s288
        %v290 = vmul.f32 %v289, %v230
        %v291 = vmul.f32 %v289, %v231
        %v292 = vadd.f32 %v256, %v290
        %v293 = vadd.f32 %v257, %v291
        %s294 = sld [smem:[#allocation2 + $0x75]]
        %v295 = vstv %s294
        %v296 = vmul.f32 %v295, %v230
        %v297 = vmul.f32 %v295, %v231
        %v298 = vadd.f32 %v262, %v296
        %v299 = vadd.f32 %v263, %v297
        %s300 = sld [smem:[#allocation2 + $0x90]]
        %v301 = vstv %s300
        %v302 = vmul.f32 %v301, %v230
        %v303 = vmul.f32 %v301, %v231
        %v304 = vadd.f32 %v268, %v302
        %v305 = vadd.f32 %v269, %v303
        %s306 = sld [smem:[#allocation2 + $0x12]]
        %v307 = vstv %s306
        %v308 = vmul.f32 %v307, %v232
        %v309 = vmul.f32 %v307, %v233
        %v310 = vadd.f32 %v274, %v308
        %v311 = vadd.f32 %v275, %v309
        %s312 = sld [smem:[#allocation2 + $0x2d]]
        %v313 = vstv %s312
        %v314 = vmul.f32 %v313, %v232
        %v315 = vmul.f32 %v313, %v233
        %v316 = vadd.f32 %v280, %v314
        %v317 = vadd.f32 %v281, %v315
        %s318 = sld [smem:[#allocation2 + $0x48]]
        %v319 = vstv %s318
        %v320 = vmul.f32 %v319, %v232
        %v321 = vmul.f32 %v319, %v233
        %v322 = vadd.f32 %v286, %v320
        %v323 = vadd.f32 %v287, %v321
        %s324 = sld [smem:[#allocation2 + $0x63]]
        %v325 = vstv %s324
        %v326 = vmul.f32 %v325, %v232
        %v327 = vmul.f32 %v325, %v233
        %v328 = vadd.f32 %v292, %v326
        %v329 = vadd.f32 %v293, %v327
        %s330 = sld [smem:[#allocation2 + $0x7e]]
        %v331 = vstv %s330
        %v332 = vmul.f32 %v331, %v232
        %v333 = vmul.f32 %v331, %v233
        %v334 = vadd.f32 %v298, %v332
        %v335 = vadd.f32 %v299, %v333
        %s336 = sld [smem:[#allocation2 + $0x99]]
        %v337 = vstv %s336
        %v338 = vmul.f32 %v337, %v232
        %v339 = vmul.f32 %v337, %v233
        %v340 = vadd.f32 %v304, %v338
        %v341 = vadd.f32 %v305, %v339
        %s342 = sld [smem:[#allocation2 + $0x1]]
        %v343 = vstv %s342
        %v344 = vmul.f32 %v343, %v228
        %v345 = vmul.f32 %v343, %v229
        %348 = vrot.lane.b32.xlu0 %v344, 127
        %v349 = vpop.permute.xlu0 %348
        %350 = vrot.lane.b32.xlu0 %v345, 127
        %v351 = vpop.permute.xlu0 %350
        %v354 = vadd.f32 %v310, %v349
        %v355 = vadd.f32 %v311, %v351
        %s356 = sld [smem:[#allocation2 + $0x1c]]
        %v357 = vstv %s356
        %v358 = vmul.f32 %v357, %v228
        %v359 = vmul.f32 %v357, %v229
        %362 = vrot.lane.b32.xlu0 %v358, 127
        %v363 = vpop.permute.xlu0 %362
        %364 = vrot.lane.b32.xlu0 %v359, 127
        %v365 = vpop.permute.xlu0 %364
        %v368 = vadd.f32 %v316, %v363
        %v369 = vadd.f32 %v317, %v365
        %s370 = sld [smem:[#allocation2 + $0x37]]
        %v371 = vstv %s370
        %v372 = vmul.f32 %v371, %v228
        %v373 = vmul.f32 %v371, %v229
        %376 = vrot.lane.b32.xlu0 %v372, 127
        %v377 = vpop.permute.xlu0 %376
        %378 = vrot.lane.b32.xlu0 %v373, 127
        %v379 = vpop.permute.xlu0 %378
        %v382 = vadd.f32 %v322, %v377
        %v383 = vadd.f32 %v323, %v379
        %s384 = sld [smem:[#allocation2 + $0x52]]
        %v385 = vstv %s384
        %v386 = vmul.f32 %v385, %v228
        %v387 = vmul.f32 %v385, %v229
        %390 = vrot.lane.b32.xlu0 %v386, 127
        %v391 = vpop.permute.xlu0 %390
        %392 = vrot.lane.b32.xlu0 %v387, 127
        %v393 = vpop.permute.xlu0 %392
        %v396 = vadd.f32 %v328, %v391
        %v397 = vadd.f32 %v329, %v393
        %s398 = sld [smem:[#allocation2 + $0x6d]]
        %v399 = vstv %s398
        %v400 = vmul.f32 %v399, %v228
        %v401 = vmul.f32 %v399, %v229
        %404 = vrot.lane.b32.xlu0 %v400, 127
        %v405 = vpop.permute.xlu0 %404
        %406 = vrot.lane.b32.xlu0 %v401, 127
        %v407 = vpop.permute.xlu0 %406
        %v410 = vadd.f32 %v334, %v405
        %v411 = vadd.f32 %v335, %v407
        %s412 = sld [smem:[#allocation2 + $0x88]]
        %v413 = vstv %s412
        %v414 = vmul.f32 %v413, %v228
        %v415 = vmul.f32 %v413, %v229
        %418 = vrot.lane.b32.xlu0 %v414, 127
        %v419 = vpop.permute.xlu0 %418
        %420 = vrot.lane.b32.xlu0 %v415, 127
        %v421 = vpop.permute.xlu0 %420
        %v424 = vadd.f32 %v340, %v419
        %v425 = vadd.f32 %v341, %v421
        %s426 = sld [smem:[#allocation2 + $0xa]]
        %v427 = vstv %s426
        %v428 = vmul.f32 %v427, %v230
        %v429 = vmul.f32 %v427, %v231
        %432 = vrot.lane.b32.xlu0 %v428, 127
        %v433 = vpop.permute.xlu0 %432
        %434 = vrot.lane.b32.xlu0 %v429, 127
        %v435 = vpop.permute.xlu0 %434
        %v438 = vadd.f32 %v354, %v433
        %v439 = vadd.f32 %v355, %v435
        %s440 = sld [smem:[#allocation2 + $0x25]]
        %v441 = vstv %s440
        %v442 = vmul.f32 %v441, %v230
        %v443 = vmul.f32 %v441, %v231
        %446 = vrot.lane.b32.xlu0 %v442, 127
        %v447 = vpop.permute.xlu0 %446
        %448 = vrot.lane.b32.xlu0 %v443, 127
        %v449 = vpop.permute.xlu0 %448
        %v452 = vadd.f32 %v368, %v447
        %v453 = vadd.f32 %v369, %v449
        %s454 = sld [smem:[#allocation2 + $0x40]]
        %v455 = vstv %s454
        %v456 = vmul.f32 %v455, %v230
        %v457 = vmul.f32 %v455, %v231
        %460 = vrot.lane.b32.xlu0 %v456, 127
        %v461 = vpop.permute.xlu0 %460
        %462 = vrot.lane.b32.xlu0 %v457, 127
        %v463 = vpop.permute.xlu0 %462
        %v466 = vadd.f32 %v382, %v461
        %v467 = vadd.f32 %v383, %v463
        %s468 = sld [smem:[#allocation2 + $0x5b]]
        %v469 = vstv %s468
        %v470 = vmul.f32 %v469, %v230
        %v471 = vmul.f32 %v469, %v231
        %474 = vrot.lane.b32.xlu0 %v470, 127
        %v475 = vpop.permute.xlu0 %474
        %476 = vrot.lane.b32.xlu0 %v471, 127
        %v477 = vpop.permute.xlu0 %476
        %v480 = vadd.f32 %v396, %v475
        %v481 = vadd.f32 %v397, %v477
        %s482 = sld [smem:[#allocation2 + $0x76]]
        %v483 = vstv %s482
        %v484 = vmul.f32 %v483, %v230
        %v485 = vmul.f32 %v483, %v231
        %488 = vrot.lane.b32.xlu0 %v484, 127
        %v489 = vpop.permute.xlu0 %488
        %490 = vrot.lane.b32.xlu0 %v485, 127
        %v491 = vpop.permute.xlu0 %490
        %v494 = vadd.f32 %v410, %v489
        %v495 = vadd.f32 %v411, %v491
        %s496 = sld [smem:[#allocation2 + $0x91]]
        %v497 = vstv %s496
        %v498 = vmul.f32 %v497, %v230
        %v499 = vmul.f32 %v497, %v231
        %502 = vrot.lane.b32.xlu0 %v498, 127
        %v503 = vpop.permute.xlu0 %502
        %504 = vrot.lane.b32.xlu0 %v499, 127
        %v505 = vpop.permute.xlu0 %504
        %v508 = vadd.f32 %v424, %v503
        %v509 = vadd.f32 %v425, %v505
        %s510 = sld [smem:[#allocation2 + $0x13]]
        %v511 = vstv %s510
        %v512 = vmul.f32 %v511, %v232
        %v513 = vmul.f32 %v511, %v233
        %516 = vrot.lane.b32.xlu0 %v512, 127
        %v517 = vpop.permute.xlu0 %516
        %518 = vrot.lane.b32.xlu0 %v513, 127
        %v519 = vpop.permute.xlu0 %518
        %v522 = vadd.f32 %v438, %v517
        %v523 = vadd.f32 %v439, %v519
        %s524 = sld [smem:[#allocation2 + $0x2e]]
        %v525 = vstv %s524
        %v526 = vmul.f32 %v525, %v232
        %v527 = vmul.f32 %v525, %v233
        %530 = vrot.lane.b32.xlu0 %v526, 127
        %v531 = vpop.permute.xlu0 %530
        %532 = vrot.lane.b32.xlu0 %v527, 127
        %v533 = vpop.permute.xlu0 %532
        %v536 = vadd.f32 %v452, %v531
        %v537 = vadd.f32 %v453, %v533
        %s538 = sld [smem:[#allocation2 + $0x49]]
        %v539 = vstv %s538
        %v540 = vmul.f32 %v539, %v232
        %v541 = vmul.f32 %v539, %v233
        %544 = vrot.lane.b32.xlu0 %v540, 127
        %v545 = vpop.permute.xlu0 %544
        %546 = vrot.lane.b32.xlu0 %v541, 127
        %v547 = vpop.permute.xlu0 %546
        %v550 = vadd.f32 %v466, %v545
        %v551 = vadd.f32 %v467, %v547
        %s552 = sld [smem:[#allocation2 + $0x64]]
        %v553 = vstv %s552
        %v554 = vmul.f32 %v553, %v232
        %v555 = vmul.f32 %v553, %v233
        %558 = vrot.lane.b32.xlu0 %v554, 127
        %v559 = vpop.permute.xlu0 %558
        %560 = vrot.lane.b32.xlu0 %v555, 127
        %v561 = vpop.permute.xlu0 %560
        %v564 = vadd.f32 %v480, %v559
        %v565 = vadd.f32 %v481, %v561
        %s566 = sld [smem:[#allocation2 + $0x7f]]
        %v567 = vstv %s566
        %v568 = vmul.f32 %v567, %v232
        %v569 = vmul.f32 %v567, %v233
        %572 = vrot.lane.b32.xlu0 %v568, 127
        %v573 = vpop.permute.xlu0 %572
        %574 = vrot.lane.b32.xlu0 %v569, 127
        %v575 = vpop.permute.xlu0 %574
        %v578 = vadd.f32 %v494, %v573
        %v579 = vadd.f32 %v495, %v575
        %s580 = sld [smem:[#allocation2 + $0x9a]]
        %v581 = vstv %s580
        %v582 = vmul.f32 %v581, %v232
        %v583 = vmul.f32 %v581, %v233
        %586 = vrot.lane.b32.xlu0 %v582, 127
        %v587 = vpop.permute.xlu0 %586
        %588 = vrot.lane.b32.xlu0 %v583, 127
        %v589 = vpop.permute.xlu0 %588
        %v592 = vadd.f32 %v508, %v587
        %v593 = vadd.f32 %v509, %v589
        %s594 = sld [smem:[#allocation2 + $0x2]]
        %v595 = vstv %s594
        %v596 = vmul.f32 %v595, %v228
        %v597 = vmul.f32 %v595, %v229
        %600 = vrot.lane.b32.xlu0 %v596, 126
        %v601 = vpop.permute.xlu0 %600
        %602 = vrot.lane.b32.xlu0 %v597, 126
        %v603 = vpop.permute.xlu0 %602
        %v606 = vadd.f32 %v522, %v601
        %v607 = vadd.f32 %v523, %v603
        %s608 = sld [smem:[#allocation2 + $0x1d]]
        %v609 = vstv %s608
        %v610 = vmul.f32 %v609, %v228
        %v611 = vmul.f32 %v609, %v229
        %614 = vrot.lane.b32.xlu0 %v610, 126
        %v615 = vpop.permute.xlu0 %614
        %616 = vrot.lane.b32.xlu0 %v611, 126
        %v617 = vpop.permute.xlu0 %616
        %v620 = vadd.f32 %v536, %v615
        %v621 = vadd.f32 %v537, %v617
        %s622 = sld [smem:[#allocation2 + $0x38]]
        %v623 = vstv %s622
        %v624 = vmul.f32 %v623, %v228
        %v625 = vmul.f32 %v623, %v229
        %628 = vrot.lane.b32.xlu0 %v624, 126
        %v629 = vpop.permute.xlu0 %628
        %630 = vrot.lane.b32.xlu0 %v625, 126
        %v631 = vpop.permute.xlu0 %630
        %v634 = vadd.f32 %v550, %v629
        %v635 = vadd.f32 %v551, %v631
        %s636 = sld [smem:[#allocation2 + $0x53]]
        %v637 = vstv %s636
        %v638 = vmul.f32 %v637, %v228
        %v639 = vmul.f32 %v637, %v229
        %642 = vrot.lane.b32.xlu0 %v638, 126
        %v643 = vpop.permute.xlu0 %642
        %644 = vrot.lane.b32.xlu0 %v639, 126
        %v645 = vpop.permute.xlu0 %644
        %v648 = vadd.f32 %v564, %v643
        %v649 = vadd.f32 %v565, %v645
        %s650 = sld [smem:[#allocation2 + $0x6e]]
        %v651 = vstv %s650
        %v652 = vmul.f32 %v651, %v228
        %v653 = vmul.f32 %v651, %v229
        %656 = vrot.lane.b32.xlu0 %v652, 126
        %v657 = vpop.permute.xlu0 %656
        %658 = vrot.lane.b32.xlu0 %v653, 126
        %v659 = vpop.permute.xlu0 %658
        %v662 = vadd.f32 %v578, %v657
        %v663 = vadd.f32 %v579, %v659
        %s664 = sld [smem:[#allocation2 + $0x89]]
        %v665 = vstv %s664
        %v666 = vmul.f32 %v665, %v228
        %v667 = vmul.f32 %v665, %v229
        %670 = vrot.lane.b32.xlu0 %v666, 126
        %v671 = vpop.permute.xlu0 %670
        %672 = vrot.lane.b32.xlu0 %v667, 126
        %v673 = vpop.permute.xlu0 %672
        %v676 = vadd.f32 %v592, %v671
        %v677 = vadd.f32 %v593, %v673
        %s678 = sld [smem:[#allocation2 + $0xb]]
        %v679 = vstv %s678
        %v680 = vmul.f32 %v679, %v230
        %v681 = vmul.f32 %v679, %v231
        %684 = vrot.lane.b32.xlu0 %v680, 126
        %v685 = vpop.permute.xlu0 %684
        %686 = vrot.lane.b32.xlu0 %v681, 126
        %v687 = vpop.permute.xlu0 %686
        %v690 = vadd.f32 %v606, %v685
        %v691 = vadd.f32 %v607, %v687
        %s692 = sld [smem:[#allocation2 + $0x26]]
        %v693 = vstv %s692
        %v694 = vmul.f32 %v693, %v230
        %v695 = vmul.f32 %v693, %v231
        %698 = vrot.lane.b32.xlu0 %v694, 126
        %v699 = vpop.permute.xlu0 %698
        %700 = vrot.lane.b32.xlu0 %v695, 126
        %v701 = vpop.permute.xlu0 %700
        %v704 = vadd.f32 %v620, %v699
        %v705 = vadd.f32 %v621, %v701
        %s706 = sld [smem:[#allocation2 + $0x41]]
        %v707 = vstv %s706
        %v708 = vmul.f32 %v707, %v230
        %v709 = vmul.f32 %v707, %v231
        %712 = vrot.lane.b32.xlu0 %v708, 126
        %v713 = vpop.permute.xlu0 %712
        %714 = vrot.lane.b32.xlu0 %v709, 126
        %v715 = vpop.permute.xlu0 %714
        %v718 = vadd.f32 %v634, %v713
        %v719 = vadd.f32 %v635, %v715
        %s720 = sld [smem:[#allocation2 + $0x5c]]
        %v721 = vstv %s720
        %v722 = vmul.f32 %v721, %v230
        %v723 = vmul.f32 %v721, %v231
        %726 = vrot.lane.b32.xlu0 %v722, 126
        %v727 = vpop.permute.xlu0 %726
        %728 = vrot.lane.b32.xlu0 %v723, 126
        %v729 = vpop.permute.xlu0 %728
        %v732 = vadd.f32 %v648, %v727
        %v733 = vadd.f32 %v649, %v729
        %s734 = sld [smem:[#allocation2 + $0x77]]
        %v735 = vstv %s734
        %v736 = vmul.f32 %v735, %v230
        %v737 = vmul.f32 %v735, %v231
        %740 = vrot.lane.b32.xlu0 %v736, 126
        %v741 = vpop.permute.xlu0 %740
        %742 = vrot.lane.b32.xlu0 %v737, 126
        %v743 = vpop.permute.xlu0 %742
        %v746 = vadd.f32 %v662, %v741
        %v747 = vadd.f32 %v663, %v743
        %s748 = sld [smem:[#allocation2 + $0x92]]
        %v749 = vstv %s748
        %v750 = vmul.f32 %v749, %v230
        %v751 = vmul.f32 %v749, %v231
        %754 = vrot.lane.b32.xlu0 %v750, 126
        %v755 = vpop.permute.xlu0 %754
        %756 = vrot.lane.b32.xlu0 %v751, 126
        %v757 = vpop.permute.xlu0 %756
        %v760 = vadd.f32 %v676, %v755
        %v761 = vadd.f32 %v677, %v757
        %s762 = sld [smem:[#allocation2 + $0x14]]
        %v763 = vstv %s762
        %v764 = vmul.f32 %v763, %v232
        %v765 = vmul.f32 %v763, %v233
        %768 = vrot.lane.b32.xlu0 %v764, 126
        %v769 = vpop.permute.xlu0 %768
        %770 = vrot.lane.b32.xlu0 %v765, 126
        %v771 = vpop.permute.xlu0 %770
        %v774 = vadd.f32 %v690, %v769
        %v775 = vadd.f32 %v691, %v771
        %s776 = sld [smem:[#allocation2 + $0x2f]]
        %v777 = vstv %s776
        %v778 = vmul.f32 %v777, %v232
        %v779 = vmul.f32 %v777, %v233
        %782 = vrot.lane.b32.xlu0 %v778, 126
        %v783 = vpop.permute.xlu0 %782
        %784 = vrot.lane.b32.xlu0 %v779, 126
        %v785 = vpop.permute.xlu0 %784
        %v788 = vadd.f32 %v704, %v783
        %v789 = vadd.f32 %v705, %v785
        %s790 = sld [smem:[#allocation2 + $0x4a]]
        %v791 = vstv %s790
        %v792 = vmul.f32 %v791, %v232
        %v793 = vmul.f32 %v791, %v233
        %796 = vrot.lane.b32.xlu0 %v792, 126
        %v797 = vpop.permute.xlu0 %796
        %798 = vrot.lane.b32.xlu0 %v793, 126
        %v799 = vpop.permute.xlu0 %798
        %v802 = vadd.f32 %v718, %v797
        %v803 = vadd.f32 %v719, %v799
        %s804 = sld [smem:[#allocation2 + $0x65]]
        %v805 = vstv %s804
        %v806 = vmul.f32 %v805, %v232
        %v807 = vmul.f32 %v805, %v233
        %810 = vrot.lane.b32.xlu0 %v806, 126
        %v811 = vpop.permute.xlu0 %810
        %812 = vrot.lane.b32.xlu0 %v807, 126
        %v813 = vpop.permute.xlu0 %812
        %v816 = vadd.f32 %v732, %v811
        %v817 = vadd.f32 %v733, %v813
        %s818 = sld [smem:[#allocation2 + $0x80]]
        %v819 = vstv %s818
        %v820 = vmul.f32 %v819, %v232
        %v821 = vmul.f32 %v819, %v233
        %824 = vrot.lane.b32.xlu0 %v820, 126
        %v825 = vpop.permute.xlu0 %824
        %826 = vrot.lane.b32.xlu0 %v821, 126
        %v827 = vpop.permute.xlu0 %826
        %v830 = vadd.f32 %v746, %v825
        %v831 = vadd.f32 %v747, %v827
        %s832 = sld [smem:[#allocation2 + $0x9b]]
        %v833 = vstv %s832
        %v834 = vmul.f32 %v833, %v232
        %v835 = vmul.f32 %v833, %v233
        %838 = vrot.lane.b32.xlu0 %v834, 126
        %v839 = vpop.permute.xlu0 %838
        %840 = vrot.lane.b32.xlu0 %v835, 126
        %v841 = vpop.permute.xlu0 %840
        %v844 = vadd.f32 %v760, %v839
        %v845 = vadd.f32 %v761, %v841
        %v846 = vld [vmem:[%s187 + $0x1] sm:$0xff]
        %v847 = vld [vmem:[%s187 + $0x9] sm:$0x3f]
        %v848 = vld [vmem:[%s187 + $0x11] sm:$0xff]
        %v849 = vld [vmem:[%s187 + $0x19] sm:$0x3f]
        %v850 = vld [vmem:[%s187 + $0x21] sm:$0xff]
        %v851 = vld [vmem:[%s187 + $0x29] sm:$0x3f]
        %s852 = sld [smem:[#allocation2 + $0x3]]
        %v853 = vstv %s852
        %v854 = vmul.f32 %v853, %v846
        %v855 = vmul.f32 %v853, %v847
        %v856 = vadd.f32 %v774, %v854
        %v857 = vadd.f32 %v775, %v855
        %s858 = sld [smem:[#allocation2 + $0x1e]]
        %v859 = vstv %s858
        %v860 = vmul.f32 %v859, %v846
        %v861 = vmul.f32 %v859, %v847
        %v862 = vadd.f32 %v788, %v860
        %v863 = vadd.f32 %v789, %v861
        %s864 = sld [smem:[#allocation2 + $0x39]]
        %v865 = vstv %s864
        %v866 = vmul.f32 %v865, %v846
        %v867 = vmul.f32 %v865, %v847
        %v868 = vadd.f32 %v802, %v866
        %v869 = vadd.f32 %v803, %v867
        %s870 = sld [smem:[#allocation2 + $0x54]]
        %v871 = vstv %s870
        %v872 = vmul.f32 %v871, %v846
        %v873 = vmul.f32 %v871, %v847
        %v874 = vadd.f32 %v816, %v872
        %v875 = vadd.f32 %v817, %v873
        %s876 = sld [smem:[#allocation2 + $0x6f]]
        %v877 = vstv %s876
        %v878 = vmul.f32 %v877, %v846
        %v879 = vmul.f32 %v877, %v847
        %v880 = vadd.f32 %v830, %v878
        %v881 = vadd.f32 %v831, %v879
        %s882 = sld [smem:[#allocation2 + $0x8a]]
        %v883 = vstv %s882
        %v884 = vmul.f32 %v883, %v846
        %v885 = vmul.f32 %v883, %v847
        %v886 = vadd.f32 %v844, %v884
        %v887 = vadd.f32 %v845, %v885
        %s888 = sld [smem:[#allocation2 + $0xc]]
        %v889 = vstv %s888
        %v890 = vmul.f32 %v889, %v848
        %v891 = vmul.f32 %v889, %v849
        %v892 = vadd.f32 %v856, %v890
        %v893 = vadd.f32 %v857, %v891
        %s894 = sld [smem:[#allocation2 + $0x27]]
        %v895 = vstv %s894
        %v896 = vmul.f32 %v895, %v848
        %v897 = vmul.f32 %v895, %v849
        %v898 = vadd.f32 %v862, %v896
        %v899 = vadd.f32 %v863, %v897
        %s900 = sld [smem:[#allocation2 + $0x42]]
        %v901 = vstv %s900
        %v902 = vmul.f32 %v901, %v848
        %v903 = vmul.f32 %v901, %v849
        %v904 = vadd.f32 %v868, %v902
        %v905 = vadd.f32 %v869, %v903
        %s906 = sld [smem:[#allocation2 + $0x5d]]
        %v907 = vstv %s906
        %v908 = vmul.f32 %v907, %v848
        %v909 = vmul.f32 %v907, %v849
        %v910 = vadd.f32 %v874, %v908
        %v911 = vadd.f32 %v875, %v909
        %s912 = sld [smem:[#allocation2 + $0x78]]
        %v913 = vstv %s912
        %v914 = vmul.f32 %v913, %v848
        %v915 = vmul.f32 %v913, %v849
        %v916 = vadd.f32 %v880, %v914
        %v917 = vadd.f32 %v881, %v915
        %s918 = sld [smem:[#allocation2 + $0x93]]
        %v919 = vstv %s918
        %v920 = vmul.f32 %v919, %v848
        %v921 = vmul.f32 %v919, %v849
        %v922 = vadd.f32 %v886, %v920
        %v923 = vadd.f32 %v887, %v921
        %s924 = sld [smem:[#allocation2 + $0x15]]
        %v925 = vstv %s924
        %v926 = vmul.f32 %v925, %v850
        %v927 = vmul.f32 %v925, %v851
        %v928 = vadd.f32 %v892, %v926
        %v929 = vadd.f32 %v893, %v927
        %s930 = sld [smem:[#allocation2 + $0x30]]
        %v931 = vstv %s930
        %v932 = vmul.f32 %v931, %v850
        %v933 = vmul.f32 %v931, %v851
        %v934 = vadd.f32 %v898, %v932
        %v935 = vadd.f32 %v899, %v933
        %s936 = sld [smem:[#allocation2 + $0x4b]]
        %v937 = vstv %s936
        %v938 = vmul.f32 %v937, %v850
        %v939 = vmul.f32 %v937, %v851
        %v940 = vadd.f32 %v904, %v938
        %v941 = vadd.f32 %v905, %v939
        %s942 = sld [smem:[#allocation2 + $0x66]]
        %v943 = vstv %s942
        %v944 = vmul.f32 %v943, %v850
        %v945 = vmul.f32 %v943, %v851
        %v946 = vadd.f32 %v910, %v944
        %v947 = vadd.f32 %v911, %v945
        %s948 = sld [smem:[#allocation2 + $0x81]]
        %v949 = vstv %s948
        %v950 = vmul.f32 %v949, %v850
        %v951 = vmul.f32 %v949, %v851
        %v952 = vadd.f32 %v916, %v950
        %v953 = vadd.f32 %v917, %v951
        %s954 = sld [smem:[#allocation2 + $0x9c]]
        %v955 = vstv %s954
        %v956 = vmul.f32 %v955, %v850
        %v957 = vmul.f32 %v955, %v851
        %v958 = vadd.f32 %v922, %v956
        %v959 = vadd.f32 %v923, %v957
        %s960 = sld [smem:[#allocation2 + $0x4]]
        %v961 = vstv %s960
        %v962 = vmul.f32 %v961, %v846
        %v963 = vmul.f32 %v961, %v847
        %966 = vrot.lane.b32.xlu0 %v962, 127
        %v967 = vpop.permute.xlu0 %966
        %968 = vrot.lane.b32.xlu0 %v963, 127
        %v969 = vpop.permute.xlu0 %968
        %v972 = vadd.f32 %v928, %v967
        %v973 = vadd.f32 %v929, %v969
        %s974 = sld [smem:[#allocation2 + $0x1f]]
        %v975 = vstv %s974
        %v976 = vmul.f32 %v975, %v846
        %v977 = vmul.f32 %v975, %v847
        %980 = vrot.lane.b32.xlu0 %v976, 127
        %v981 = vpop.permute.xlu0 %980
        %982 = vrot.lane.b32.xlu0 %v977, 127
        %v983 = vpop.permute.xlu0 %982
        %v986 = vadd.f32 %v934, %v981
        %v987 = vadd.f32 %v935, %v983
        %s988 = sld [smem:[#allocation2 + $0x3a]]
        %v989 = vstv %s988
        %v990 = vmul.f32 %v989, %v846
        %v991 = vmul.f32 %v989, %v847
        %994 = vrot.lane.b32.xlu0 %v990, 127
        %v995 = vpop.permute.xlu0 %994
        %996 = vrot.lane.b32.xlu0 %v991, 127
        %v997 = vpop.permute.xlu0 %996
        %v1000 = vadd.f32 %v940, %v995
        %v1001 = vadd.f32 %v941, %v997
        %s1002 = sld [smem:[#allocation2 + $0x55]]
        %v1003 = vstv %s1002
        %v1004 = vmul.f32 %v1003, %v846
        %v1005 = vmul.f32 %v1003, %v847
        %1008 = vrot.lane.b32.xlu0 %v1004, 127
        %v1009 = vpop.permute.xlu0 %1008
        %1010 = vrot.lane.b32.xlu0 %v1005, 127
        %v1011 = vpop.permute.xlu0 %1010
        %v1014 = vadd.f32 %v946, %v1009
        %v1015 = vadd.f32 %v947, %v1011
        %s1016 = sld [smem:[#allocation2 + $0x70]]
        %v1017 = vstv %s1016
        %v1018 = vmul.f32 %v1017, %v846
        %v1019 = vmul.f32 %v1017, %v847
        %1022 = vrot.lane.b32.xlu0 %v1018, 127
        %v1023 = vpop.permute.xlu0 %1022
        %1024 = vrot.lane.b32.xlu0 %v1019, 127
        %v1025 = vpop.permute.xlu0 %1024
        %v1028 = vadd.f32 %v952, %v1023
        %v1029 = vadd.f32 %v953, %v1025
        %s1030 = sld [smem:[#allocation2 + $0x8b]]
        %v1031 = vstv %s1030
        %v1032 = vmul.f32 %v1031, %v846
        %v1033 = vmul.f32 %v1031, %v847
        %1036 = vrot.lane.b32.xlu0 %v1032, 127
        %v1037 = vpop.permute.xlu0 %1036
        %1038 = vrot.lane.b32.xlu0 %v1033, 127
        %v1039 = vpop.permute.xlu0 %1038
        %v1042 = vadd.f32 %v958, %v1037
        %v1043 = vadd.f32 %v959, %v1039
        %s1044 = sld [smem:[#allocation2 + $0xd]]
        %v1045 = vstv %s1044
        %v1046 = vmul.f32 %v1045, %v848
        %v1047 = vmul.f32 %v1045, %v849
        %1050 = vrot.lane.b32.xlu0 %v1046, 127
        %v1051 = vpop.permute.xlu0 %1050
        %1052 = vrot.lane.b32.xlu0 %v1047, 127
        %v1053 = vpop.permute.xlu0 %1052
        %v1056 = vadd.f32 %v972, %v1051
        %v1057 = vadd.f32 %v973, %v1053
        %s1058 = sld [smem:[#allocation2 + $0x28]]
        %v1059 = vstv %s1058
        %v1060 = vmul.f32 %v1059, %v848
        %v1061 = vmul.f32 %v1059, %v849
        %1064 = vrot.lane.b32.xlu0 %v1060, 127
        %v1065 = vpop.permute.xlu0 %1064
        %1066 = vrot.lane.b32.xlu0 %v1061, 127
        %v1067 = vpop.permute.xlu0 %1066
        %v1070 = vadd.f32 %v986, %v1065
        %v1071 = vadd.f32 %v987, %v1067
        %s1072 = sld [smem:[#allocation2 + $0x43]]
        %v1073 = vstv %s1072
        %v1074 = vmul.f32 %v1073, %v848
        %v1075 = vmul.f32 %v1073, %v849
        %1078 = vrot.lane.b32.xlu0 %v1074, 127
        %v1079 = vpop.permute.xlu0 %1078
        %1080 = vrot.lane.b32.xlu0 %v1075, 127
        %v1081 = vpop.permute.xlu0 %1080
        %v1084 = vadd.f32 %v1000, %v1079
        %v1085 = vadd.f32 %v1001, %v1081
        %s1086 = sld [smem:[#allocation2 + $0x5e]]
        %v1087 = vstv %s1086
        %v1088 = vmul.f32 %v1087, %v848
        %v1089 = vmul.f32 %v1087, %v849
        %1092 = vrot.lane.b32.xlu0 %v1088, 127
        %v1093 = vpop.permute.xlu0 %1092
        %1094 = vrot.lane.b32.xlu0 %v1089, 127
        %v1095 = vpop.permute.xlu0 %1094
        %v1098 = vadd.f32 %v1014, %v1093
        %v1099 = vadd.f32 %v1015, %v1095
        %s1100 = sld [smem:[#allocation2 + $0x79]]
        %v1101 = vstv %s1100
        %v1102 = vmul.f32 %v1101, %v848
        %v1103 = vmul.f32 %v1101, %v849
        %1106 = vrot.lane.b32.xlu0 %v1102, 127
        %v1107 = vpop.permute.xlu0 %1106
        %1108 = vrot.lane.b32.xlu0 %v1103, 127
        %v1109 = vpop.permute.xlu0 %1108
        %v1112 = vadd.f32 %v1028, %v1107
        %v1113 = vadd.f32 %v1029, %v1109
        %s1114 = sld [smem:[#allocation2 + $0x94]]
        %v1115 = vstv %s1114
        %v1116 = vmul.f32 %v1115, %v848
        %v1117 = vmul.f32 %v1115, %v849
        %1120 = vrot.lane.b32.xlu0 %v1116, 127
        %v1121 = vpop.permute.xlu0 %1120
        %1122 = vrot.lane.b32.xlu0 %v1117, 127
        %v1123 = vpop.permute.xlu0 %1122
        %v1126 = vadd.f32 %v1042, %v1121
        %v1127 = vadd.f32 %v1043, %v1123
        %s1128 = sld [smem:[#allocation2 + $0x16]]
        %v1129 = vstv %s1128
        %v1130 = vmul.f32 %v1129, %v850
        %v1131 = vmul.f32 %v1129, %v851
        %1134 = vrot.lane.b32.xlu0 %v1130, 127
        %v1135 = vpop.permute.xlu0 %1134
        %1136 = vrot.lane.b32.xlu0 %v1131, 127
        %v1137 = vpop.permute.xlu0 %1136
        %v1140 = vadd.f32 %v1056, %v1135
        %v1141 = vadd.f32 %v1057, %v1137
        %s1142 = sld [smem:[#allocation2 + $0x31]]
        %v1143 = vstv %s1142
        %v1144 = vmul.f32 %v1143, %v850
        %v1145 = vmul.f32 %v1143, %v851
        %1148 = vrot.lane.b32.xlu0 %v1144, 127
        %v1149 = vpop.permute.xlu0 %1148
        %1150 = vrot.lane.b32.xlu0 %v1145, 127
        %v1151 = vpop.permute.xlu0 %1150
        %v1154 = vadd.f32 %v1070, %v1149
        %v1155 = vadd.f32 %v1071, %v1151
        %s1156 = sld [smem:[#allocation2 + $0x4c]]
        %v1157 = vstv %s1156
        %v1158 = vmul.f32 %v1157, %v850
        %v1159 = vmul.f32 %v1157, %v851
        %1162 = vrot.lane.b32.xlu0 %v1158, 127
        %v1163 = vpop.permute.xlu0 %1162
        %1164 = vrot.lane.b32.xlu0 %v1159, 127
        %v1165 = vpop.permute.xlu0 %1164
        %v1168 = vadd.f32 %v1084, %v1163
        %v1169 = vadd.f32 %v1085, %v1165
        %s1170 = sld [smem:[#allocation2 + $0x67]]
        %v1171 = vstv %s1170
        %v1172 = vmul.f32 %v1171, %v850
        %v1173 = vmul.f32 %v1171, %v851
        %1176 = vrot.lane.b32.xlu0 %v1172, 127
        %v1177 = vpop.permute.xlu0 %1176
        %1178 = vrot.lane.b32.xlu0 %v1173, 127
        %v1179 = vpop.permute.xlu0 %1178
        %v1182 = vadd.f32 %v1098, %v1177
        %v1183 = vadd.f32 %v1099, %v1179
        %s1184 = sld [smem:[#allocation2 + $0x82]]
        %v1185 = vstv %s1184
        %v1186 = vmul.f32 %v1185, %v850
        %v1187 = vmul.f32 %v1185, %v851
        %1190 = vrot.lane.b32.xlu0 %v1186, 127
        %v1191 = vpop.permute.xlu0 %1190
        %1192 = vrot.lane.b32.xlu0 %v1187, 127
        %v1193 = vpop.permute.xlu0 %1192
        %v1196 = vadd.f32 %v1112, %v1191
        %v1197 = vadd.f32 %v1113, %v1193
        %s1198 = sld [smem:[#allocation2 + $0x9d]]
        %v1199 = vstv %s1198
        %v1200 = vmul.f32 %v1199, %v850
        %v1201 = vmul.f32 %v1199, %v851
        %1204 = vrot.lane.b32.xlu0 %v1200, 127
        %v1205 = vpop.permute.xlu0 %1204
        %1206 = vrot.lane.b32.xlu0 %v1201, 127
        %v1207 = vpop.permute.xlu0 %1206
        %v1210 = vadd.f32 %v1126, %v1205
        %v1211 = vadd.f32 %v1127, %v1207
        %s1212 = sld [smem:[#allocation2 + $0x5]]
        %v1213 = vstv %s1212
        %v1214 = vmul.f32 %v1213, %v846
        %v1215 = vmul.f32 %v1213, %v847
        %1218 = vrot.lane.b32.xlu0 %v1214, 126
        %v1219 = vpop.permute.xlu0 %1218
        %1220 = vrot.lane.b32.xlu0 %v1215, 126
        %v1221 = vpop.permute.xlu0 %1220
        %v1224 = vadd.f32 %v1140, %v1219
        %v1225 = vadd.f32 %v1141, %v1221
        %s1226 = sld [smem:[#allocation2 + $0x20]]
        %v1227 = vstv %s1226
        %v1228 = vmul.f32 %v1227, %v846
        %v1229 = vmul.f32 %v1227, %v847
        %1232 = vrot.lane.b32.xlu0 %v1228, 126
        %v1233 = vpop.permute.xlu0 %1232
        %1234 = vrot.lane.b32.xlu0 %v1229, 126
        %v1235 = vpop.permute.xlu0 %1234
        %v1238 = vadd.f32 %v1154, %v1233
        %v1239 = vadd.f32 %v1155, %v1235
        %s1240 = sld [smem:[#allocation2 + $0x3b]]
        %v1241 = vstv %s1240
        %v1242 = vmul.f32 %v1241, %v846
        %v1243 = vmul.f32 %v1241, %v847
        %1246 = vrot.lane.b32.xlu0 %v1242, 126
        %v1247 = vpop.permute.xlu0 %1246
        %1248 = vrot.lane.b32.xlu0 %v1243, 126
        %v1249 = vpop.permute.xlu0 %1248
        %v1252 = vadd.f32 %v1168, %v1247
        %v1253 = vadd.f32 %v1169, %v1249
        %s1254 = sld [smem:[#allocation2 + $0x56]]
        %v1255 = vstv %s1254
        %v1256 = vmul.f32 %v1255, %v846
        %v1257 = vmul.f32 %v1255, %v847
        %1260 = vrot.lane.b32.xlu0 %v1256, 126
        %v1261 = vpop.permute.xlu0 %1260
        %1262 = vrot.lane.b32.xlu0 %v1257, 126
        %v1263 = vpop.permute.xlu0 %1262
        %v1266 = vadd.f32 %v1182, %v1261
        %v1267 = vadd.f32 %v1183, %v1263
        %s1268 = sld [smem:[#allocation2 + $0x71]]
        %v1269 = vstv %s1268
        %v1270 = vmul.f32 %v1269, %v846
        %v1271 = vmul.f32 %v1269, %v847
        %1274 = vrot.lane.b32.xlu0 %v1270, 126
        %v1275 = vpop.permute.xlu0 %1274
        %1276 = vrot.lane.b32.xlu0 %v1271, 126
        %v1277 = vpop.permute.xlu0 %1276
        %v1280 = vadd.f32 %v1196, %v1275
        %v1281 = vadd.f32 %v1197, %v1277
        %s1282 = sld [smem:[#allocation2 + $0x8c]]
        %v1283 = vstv %s1282
        %v1284 = vmul.f32 %v1283, %v846
        %v1285 = vmul.f32 %v1283, %v847
        %1288 = vrot.lane.b32.xlu0 %v1284, 126
        %v1289 = vpop.permute.xlu0 %1288
        %1290 = vrot.lane.b32.xlu0 %v1285, 126
        %v1291 = vpop.permute.xlu0 %1290
        %v1294 = vadd.f32 %v1210, %v1289
        %v1295 = vadd.f32 %v1211, %v1291
        %s1296 = sld [smem:[#allocation2 + $0xe]]
        %v1297 = vstv %s1296
        %v1298 = vmul.f32 %v1297, %v848
        %v1299 = vmul.f32 %v1297, %v849
        %1302 = vrot.lane.b32.xlu0 %v1298, 126
        %v1303 = vpop.permute.xlu0 %1302
        %1304 = vrot.lane.b32.xlu0 %v1299, 126
        %v1305 = vpop.permute.xlu0 %1304
        %v1308 = vadd.f32 %v1224, %v1303
        %v1309 = vadd.f32 %v1225, %v1305
        %s1310 = sld [smem:[#allocation2 + $0x29]]
        %v1311 = vstv %s1310
        %v1312 = vmul.f32 %v1311, %v848
        %v1313 = vmul.f32 %v1311, %v849
        %1316 = vrot.lane.b32.xlu0 %v1312, 126
        %v1317 = vpop.permute.xlu0 %1316
        %1318 = vrot.lane.b32.xlu0 %v1313, 126
        %v1319 = vpop.permute.xlu0 %1318
        %v1322 = vadd.f32 %v1238, %v1317
        %v1323 = vadd.f32 %v1239, %v1319
        %s1324 = sld [smem:[#allocation2 + $0x44]]
        %v1325 = vstv %s1324
        %v1326 = vmul.f32 %v1325, %v848
        %v1327 = vmul.f32 %v1325, %v849
        %1330 = vrot.lane.b32.xlu0 %v1326, 126
        %v1331 = vpop.permute.xlu0 %1330
        %1332 = vrot.lane.b32.xlu0 %v1327, 126
        %v1333 = vpop.permute.xlu0 %1332
        %v1336 = vadd.f32 %v1252, %v1331
        %v1337 = vadd.f32 %v1253, %v1333
        %s1338 = sld [smem:[#allocation2 + $0x5f]]
        %v1339 = vstv %s1338
        %v1340 = vmul.f32 %v1339, %v848
        %v1341 = vmul.f32 %v1339, %v849
        %1344 = vrot.lane.b32.xlu0 %v1340, 126
        %v1345 = vpop.permute.xlu0 %1344
        %1346 = vrot.lane.b32.xlu0 %v1341, 126
        %v1347 = vpop.permute.xlu0 %1346
        %v1350 = vadd.f32 %v1266, %v1345
        %v1351 = vadd.f32 %v1267, %v1347
        %s1352 = sld [smem:[#allocation2 + $0x7a]]
        %v1353 = vstv %s1352
        %v1354 = vmul.f32 %v1353, %v848
        %v1355 = vmul.f32 %v1353, %v849
        %1358 = vrot.lane.b32.xlu0 %v1354, 126
        %v1359 = vpop.permute.xlu0 %1358
        %1360 = vrot.lane.b32.xlu0 %v1355, 126
        %v1361 = vpop.permute.xlu0 %1360
        %v1364 = vadd.f32 %v1280, %v1359
        %v1365 = vadd.f32 %v1281, %v1361
        %s1366 = sld [smem:[#allocation2 + $0x95]]
        %v1367 = vstv %s1366
        %v1368 = vmul.f32 %v1367, %v848
        %v1369 = vmul.f32 %v1367, %v849
        %1372 = vrot.lane.b32.xlu0 %v1368, 126
        %v1373 = vpop.permute.xlu0 %1372
        %1374 = vrot.lane.b32.xlu0 %v1369, 126
        %v1375 = vpop.permute.xlu0 %1374
        %v1378 = vadd.f32 %v1294, %v1373
        %v1379 = vadd.f32 %v1295, %v1375
        %s1380 = sld [smem:[#allocation2 + $0x17]]
        %v1381 = vstv %s1380
        %v1382 = vmul.f32 %v1381, %v850
        %v1383 = vmul.f32 %v1381, %v851
        %1386 = vrot.lane.b32.xlu0 %v1382, 126
        %v1387 = vpop.permute.xlu0 %1386
        %1388 = vrot.lane.b32.xlu0 %v1383, 126
        %v1389 = vpop.permute.xlu0 %1388
        %v1392 = vadd.f32 %v1308, %v1387
        %v1393 = vadd.f32 %v1309, %v1389
        %s1394 = sld [smem:[#allocation2 + $0x32]]
        %v1395 = vstv %s1394
        %v1396 = vmul.f32 %v1395, %v850
        %v1397 = vmul.f32 %v1395, %v851
        %1400 = vrot.lane.b32.xlu0 %v1396, 126
        %v1401 = vpop.permute.xlu0 %1400
        %1402 = vrot.lane.b32.xlu0 %v1397, 126
        %v1403 = vpop.permute.xlu0 %1402
        %v1406 = vadd.f32 %v1322, %v1401
        %v1407 = vadd.f32 %v1323, %v1403
        %s1408 = sld [smem:[#allocation2 + $0x4d]]
        %v1409 = vstv %s1408
        %v1410 = vmul.f32 %v1409, %v850
        %v1411 = vmul.f32 %v1409, %v851
        %1414 = vrot.lane.b32.xlu0 %v1410, 126
        %v1415 = vpop.permute.xlu0 %1414
        %1416 = vrot.lane.b32.xlu0 %v1411, 126
        %v1417 = vpop.permute.xlu0 %1416
        %v1420 = vadd.f32 %v1336, %v1415
        %v1421 = vadd.f32 %v1337, %v1417
        %s1422 = sld [smem:[#allocation2 + $0x68]]
        %v1423 = vstv %s1422
        %v1424 = vmul.f32 %v1423, %v850
        %v1425 = vmul.f32 %v1423, %v851
        %1428 = vrot.lane.b32.xlu0 %v1424, 126
        %v1429 = vpop.permute.xlu0 %1428
        %1430 = vrot.lane.b32.xlu0 %v1425, 126
        %v1431 = vpop.permute.xlu0 %1430
        %v1434 = vadd.f32 %v1350, %v1429
        %v1435 = vadd.f32 %v1351, %v1431
        %s1436 = sld [smem:[#allocation2 + $0x83]]
        %v1437 = vstv %s1436
        %v1438 = vmul.f32 %v1437, %v850
        %v1439 = vmul.f32 %v1437, %v851
        %1442 = vrot.lane.b32.xlu0 %v1438, 126
        %v1443 = vpop.permute.xlu0 %1442
        %1444 = vrot.lane.b32.xlu0 %v1439, 126
        %v1445 = vpop.permute.xlu0 %1444
        %v1448 = vadd.f32 %v1364, %v1443
        %v1449 = vadd.f32 %v1365, %v1445
        %s1450 = sld [smem:[#allocation2 + $0x9e]]
        %v1451 = vstv %s1450
        %v1452 = vmul.f32 %v1451, %v850
        %v1453 = vmul.f32 %v1451, %v851
        %1456 = vrot.lane.b32.xlu0 %v1452, 126
        %v1457 = vpop.permute.xlu0 %1456
        %1458 = vrot.lane.b32.xlu0 %v1453, 126
        %v1459 = vpop.permute.xlu0 %1458
        %v1462 = vadd.f32 %v1378, %v1457
        %v1463 = vadd.f32 %v1379, %v1459
        %v1464 = vld [vmem:[%s187 + $0x2] sm:$0xff]
        %v1465 = vld [vmem:[%s187 + $0xa] sm:$0x3f]
        %v1466 = vld [vmem:[%s187 + $0x12] sm:$0xff]
        %v1467 = vld [vmem:[%s187 + $0x1a] sm:$0x3f]
        %v1468 = vld [vmem:[%s187 + $0x22] sm:$0xff]
        %v1469 = vld [vmem:[%s187 + $0x2a] sm:$0x3f]
        %s1470 = sld [smem:[#allocation2 + $0x6]]
        %v1471 = vstv %s1470
        %v1472 = vmul.f32 %v1471, %v1464
        %v1473 = vmul.f32 %v1471, %v1465
        %v1474 = vadd.f32 %v1392, %v1472
        %v1475 = vadd.f32 %v1393, %v1473
        %s1476 = sld [smem:[#allocation2 + $0x21]]
        %v1477 = vstv %s1476
        %v1478 = vmul.f32 %v1477, %v1464
        %v1479 = vmul.f32 %v1477, %v1465
        %v1480 = vadd.f32 %v1406, %v1478
        %v1481 = vadd.f32 %v1407, %v1479
        %s1482 = sld [smem:[#allocation2 + $0x3c]]
        %v1483 = vstv %s1482
        %v1484 = vmul.f32 %v1483, %v1464
        %v1485 = vmul.f32 %v1483, %v1465
        %v1486 = vadd.f32 %v1420, %v1484
        %v1487 = vadd.f32 %v1421, %v1485
        %s1488 = sld [smem:[#allocation2 + $0x57]]
        %v1489 = vstv %s1488
        %v1490 = vmul.f32 %v1489, %v1464
        %v1491 = vmul.f32 %v1489, %v1465
        %v1492 = vadd.f32 %v1434, %v1490
        %v1493 = vadd.f32 %v1435, %v1491
        %s1494 = sld [smem:[#allocation2 + $0x72]]
        %v1495 = vstv %s1494
        %v1496 = vmul.f32 %v1495, %v1464
        %v1497 = vmul.f32 %v1495, %v1465
        %v1498 = vadd.f32 %v1448, %v1496
        %v1499 = vadd.f32 %v1449, %v1497
        %s1500 = sld [smem:[#allocation2 + $0x8d]]
        %v1501 = vstv %s1500
        %v1502 = vmul.f32 %v1501, %v1464
        %v1503 = vmul.f32 %v1501, %v1465
        %v1504 = vadd.f32 %v1462, %v1502
        %v1505 = vadd.f32 %v1463, %v1503
        %s1506 = sld [smem:[#allocation2 + $0xf]]
        %v1507 = vstv %s1506
        %v1508 = vmul.f32 %v1507, %v1466
        %v1509 = vmul.f32 %v1507, %v1467
        %v1510 = vadd.f32 %v1474, %v1508
        %v1511 = vadd.f32 %v1475, %v1509
        %s1512 = sld [smem:[#allocation2 + $0x2a]]
        %v1513 = vstv %s1512
        %v1514 = vmul.f32 %v1513, %v1466
        %v1515 = vmul.f32 %v1513, %v1467
        %v1516 = vadd.f32 %v1480, %v1514
        %v1517 = vadd.f32 %v1481, %v1515
        %s1518 = sld [smem:[#allocation2 + $0x45]]
        %v1519 = vstv %s1518
        %v1520 = vmul.f32 %v1519, %v1466
        %v1521 = vmul.f32 %v1519, %v1467
        %v1522 = vadd.f32 %v1486, %v1520
        %v1523 = vadd.f32 %v1487, %v1521
        %s1524 = sld [smem:[#allocation2 + $0x60]]
        %v1525 = vstv %s1524
        %v1526 = vmul.f32 %v1525, %v1466
        %v1527 = vmul.f32 %v1525, %v1467
        %v1528 = vadd.f32 %v1492, %v1526
        %v1529 = vadd.f32 %v1493, %v1527
        %s1530 = sld [smem:[#allocation2 + $0x7b]]
        %v1531 = vstv %s1530
        %v1532 = vmul.f32 %v1531, %v1466
        %v1533 = vmul.f32 %v1531, %v1467
        %v1534 = vadd.f32 %v1498, %v1532
        %v1535 = vadd.f32 %v1499, %v1533
        %s1536 = sld [smem:[#allocation2 + $0x96]]
        %v1537 = vstv %s1536
        %v1538 = vmul.f32 %v1537, %v1466
        %v1539 = vmul.f32 %v1537, %v1467
        %v1540 = vadd.f32 %v1504, %v1538
        %v1541 = vadd.f32 %v1505, %v1539
        %s1542 = sld [smem:[#allocation2 + $0x18]]
        %v1543 = vstv %s1542
        %v1544 = vmul.f32 %v1543, %v1468
        %v1545 = vmul.f32 %v1543, %v1469
        %v1546 = vadd.f32 %v1510, %v1544
        %v1547 = vadd.f32 %v1511, %v1545
        %s1548 = sld [smem:[#allocation2 + $0x33]]
        %v1549 = vstv %s1548
        %v1550 = vmul.f32 %v1549, %v1468
        %v1551 = vmul.f32 %v1549, %v1469
        %v1552 = vadd.f32 %v1516, %v1550
        %v1553 = vadd.f32 %v1517, %v1551
        %s1554 = sld [smem:[#allocation2 + $0x4e]]
        %v1555 = vstv %s1554
        %v1556 = vmul.f32 %v1555, %v1468
        %v1557 = vmul.f32 %v1555, %v1469
        %v1558 = vadd.f32 %v1522, %v1556
        %v1559 = vadd.f32 %v1523, %v1557
        %s1560 = sld [smem:[#allocation2 + $0x69]]
        %v1561 = vstv %s1560
        %v1562 = vmul.f32 %v1561, %v1468
        %v1563 = vmul.f32 %v1561, %v1469
        %v1564 = vadd.f32 %v1528, %v1562
        %v1565 = vadd.f32 %v1529, %v1563
        %s1566 = sld [smem:[#allocation2 + $0x84]]
        %v1567 = vstv %s1566
        %v1568 = vmul.f32 %v1567, %v1468
        %v1569 = vmul.f32 %v1567, %v1469
        %v1570 = vadd.f32 %v1534, %v1568
        %v1571 = vadd.f32 %v1535, %v1569
        %s1572 = sld [smem:[#allocation2 + $0x9f]]
        %v1573 = vstv %s1572
        %v1574 = vmul.f32 %v1573, %v1468
        %v1575 = vmul.f32 %v1573, %v1469
        %v1576 = vadd.f32 %v1540, %v1574
        %v1577 = vadd.f32 %v1541, %v1575
        %s1578 = sld [smem:[#allocation2 + $0x7]]
        %v1579 = vstv %s1578
        %v1580 = vmul.f32 %v1579, %v1464
        %v1581 = vmul.f32 %v1579, %v1465
        %1584 = vrot.lane.b32.xlu0 %v1580, 127
        %v1585 = vpop.permute.xlu0 %1584
        %1586 = vrot.lane.b32.xlu0 %v1581, 127
        %v1587 = vpop.permute.xlu0 %1586
        %v1590 = vadd.f32 %v1546, %v1585
        %v1591 = vadd.f32 %v1547, %v1587
        %s1592 = sld [smem:[#allocation2 + $0x22]]
        %v1593 = vstv %s1592
        %v1594 = vmul.f32 %v1593, %v1464
        %v1595 = vmul.f32 %v1593, %v1465
        %1598 = vrot.lane.b32.xlu0 %v1594, 127
        %v1599 = vpop.permute.xlu0 %1598
        %1600 = vrot.lane.b32.xlu0 %v1595, 127
        %v1601 = vpop.permute.xlu0 %1600
        %v1604 = vadd.f32 %v1552, %v1599
        %v1605 = vadd.f32 %v1553, %v1601
        %s1606 = sld [smem:[#allocation2 + $0x3d]]
        %v1607 = vstv %s1606
        %v1608 = vmul.f32 %v1607, %v1464
        %v1609 = vmul.f32 %v1607, %v1465
        %1612 = vrot.lane.b32.xlu0 %v1608, 127
        %v1613 = vpop.permute.xlu0 %1612
        %1614 = vrot.lane.b32.xlu0 %v1609, 127
        %v1615 = vpop.permute.xlu0 %1614
        %v1618 = vadd.f32 %v1558, %v1613
        %v1619 = vadd.f32 %v1559, %v1615
        %s1620 = sld [smem:[#allocation2 + $0x58]]
        %v1621 = vstv %s1620
        %v1622 = vmul.f32 %v1621, %v1464
        %v1623 = vmul.f32 %v1621, %v1465
        %1626 = vrot.lane.b32.xlu0 %v1622, 127
        %v1627 = vpop.permute.xlu0 %1626
        %1628 = vrot.lane.b32.xlu0 %v1623, 127
        %v1629 = vpop.permute.xlu0 %1628
        %v1632 = vadd.f32 %v1564, %v1627
        %v1633 = vadd.f32 %v1565, %v1629
        %s1634 = sld [smem:[#allocation2 + $0x73]]
        %v1635 = vstv %s1634
        %v1636 = vmul.f32 %v1635, %v1464
        %v1637 = vmul.f32 %v1635, %v1465
        %1640 = vrot.lane.b32.xlu0 %v1636, 127
        %v1641 = vpop.permute.xlu0 %1640
        %1642 = vrot.lane.b32.xlu0 %v1637, 127
        %v1643 = vpop.permute.xlu0 %1642
        %v1646 = vadd.f32 %v1570, %v1641
        %v1647 = vadd.f32 %v1571, %v1643
        %s1648 = sld [smem:[#allocation2 + $0x8e]]
        %v1649 = vstv %s1648
        %v1650 = vmul.f32 %v1649, %v1464
        %v1651 = vmul.f32 %v1649, %v1465
        %1654 = vrot.lane.b32.xlu0 %v1650, 127
        %v1655 = vpop.permute.xlu0 %1654
        %1656 = vrot.lane.b32.xlu0 %v1651, 127
        %v1657 = vpop.permute.xlu0 %1656
        %v1660 = vadd.f32 %v1576, %v1655
        %v1661 = vadd.f32 %v1577, %v1657
        %s1662 = sld [smem:[#allocation2 + $0x10]]
        %v1663 = vstv %s1662
        %v1664 = vmul.f32 %v1663, %v1466
        %v1665 = vmul.f32 %v1663, %v1467
        %1668 = vrot.lane.b32.xlu0 %v1664, 127
        %v1669 = vpop.permute.xlu0 %1668
        %1670 = vrot.lane.b32.xlu0 %v1665, 127
        %v1671 = vpop.permute.xlu0 %1670
        %v1674 = vadd.f32 %v1590, %v1669
        %v1675 = vadd.f32 %v1591, %v1671
        %s1676 = sld [smem:[#allocation2 + $0x2b]]
        %v1677 = vstv %s1676
        %v1678 = vmul.f32 %v1677, %v1466
        %v1679 = vmul.f32 %v1677, %v1467
        %1682 = vrot.lane.b32.xlu0 %v1678, 127
        %v1683 = vpop.permute.xlu0 %1682
        %1684 = vrot.lane.b32.xlu0 %v1679, 127
        %v1685 = vpop.permute.xlu0 %1684
        %v1688 = vadd.f32 %v1604, %v1683
        %v1689 = vadd.f32 %v1605, %v1685
        %s1690 = sld [smem:[#allocation2 + $0x46]]
        %v1691 = vstv %s1690
        %v1692 = vmul.f32 %v1691, %v1466
        %v1693 = vmul.f32 %v1691, %v1467
        %1696 = vrot.lane.b32.xlu0 %v1692, 127
        %v1697 = vpop.permute.xlu0 %1696
        %1698 = vrot.lane.b32.xlu0 %v1693, 127
        %v1699 = vpop.permute.xlu0 %1698
        %v1702 = vadd.f32 %v1618, %v1697
        %v1703 = vadd.f32 %v1619, %v1699
        %s1704 = sld [smem:[#allocation2 + $0x61]]
        %v1705 = vstv %s1704
        %v1706 = vmul.f32 %v1705, %v1466
        %v1707 = vmul.f32 %v1705, %v1467
        %1710 = vrot.lane.b32.xlu0 %v1706, 127
        %v1711 = vpop.permute.xlu0 %1710
        %1712 = vrot.lane.b32.xlu0 %v1707, 127
        %v1713 = vpop.permute.xlu0 %1712
        %v1716 = vadd.f32 %v1632, %v1711
        %v1717 = vadd.f32 %v1633, %v1713
        %s1718 = sld [smem:[#allocation2 + $0x7c]]
        %v1719 = vstv %s1718
        %v1720 = vmul.f32 %v1719, %v1466
        %v1721 = vmul.f32 %v1719, %v1467
        %1724 = vrot.lane.b32.xlu0 %v1720, 127
        %v1725 = vpop.permute.xlu0 %1724
        %1726 = vrot.lane.b32.xlu0 %v1721, 127
        %v1727 = vpop.permute.xlu0 %1726
        %v1730 = vadd.f32 %v1646, %v1725
        %v1731 = vadd.f32 %v1647, %v1727
        %s1732 = sld [smem:[#allocation2 + $0x97]]
        %v1733 = vstv %s1732
        %v1734 = vmul.f32 %v1733, %v1466
        %v1735 = vmul.f32 %v1733, %v1467
        %1738 = vrot.lane.b32.xlu0 %v1734, 127
        %v1739 = vpop.permute.xlu0 %1738
        %1740 = vrot.lane.b32.xlu0 %v1735, 127
        %v1741 = vpop.permute.xlu0 %1740
        %v1744 = vadd.f32 %v1660, %v1739
        %v1745 = vadd.f32 %v1661, %v1741
        %s1746 = sld [smem:[#allocation2 + $0x19]]
        %v1747 = vstv %s1746
        %v1748 = vmul.f32 %v1747, %v1468
        %v1749 = vmul.f32 %v1747, %v1469
        %1752 = vrot.lane.b32.xlu0 %v1748, 127
        %v1753 = vpop.permute.xlu0 %1752
        %1754 = vrot.lane.b32.xlu0 %v1749, 127
        %v1755 = vpop.permute.xlu0 %1754
        %v1758 = vadd.f32 %v1674, %v1753
        %v1759 = vadd.f32 %v1675, %v1755
        %s1760 = sld [smem:[#allocation2 + $0x34]]
        %v1761 = vstv %s1760
        %v1762 = vmul.f32 %v1761, %v1468
        %v1763 = vmul.f32 %v1761, %v1469
        %1766 = vrot.lane.b32.xlu0 %v1762, 127
        %v1767 = vpop.permute.xlu0 %1766
        %1768 = vrot.lane.b32.xlu0 %v1763, 127
        %v1769 = vpop.permute.xlu0 %1768
        %v1772 = vadd.f32 %v1688, %v1767
        %v1773 = vadd.f32 %v1689, %v1769
        %s1774 = sld [smem:[#allocation2 + $0x4f]]
        %v1775 = vstv %s1774
        %v1776 = vmul.f32 %v1775, %v1468
        %v1777 = vmul.f32 %v1775, %v1469
        %1780 = vrot.lane.b32.xlu0 %v1776, 127
        %v1781 = vpop.permute.xlu0 %1780
        %1782 = vrot.lane.b32.xlu0 %v1777, 127
        %v1783 = vpop.permute.xlu0 %1782
        %v1786 = vadd.f32 %v1702, %v1781
        %v1787 = vadd.f32 %v1703, %v1783
        %s1788 = sld [smem:[#allocation2 + $0x6a]]
        %v1789 = vstv %s1788
        %v1790 = vmul.f32 %v1789, %v1468
        %v1791 = vmul.f32 %v1789, %v1469
        %1794 = vrot.lane.b32.xlu0 %v1790, 127
        %v1795 = vpop.permute.xlu0 %1794
        %1796 = vrot.lane.b32.xlu0 %v1791, 127
        %v1797 = vpop.permute.xlu0 %1796
        %v1800 = vadd.f32 %v1716, %v1795
        %v1801 = vadd.f32 %v1717, %v1797
        %s1802 = sld [smem:[#allocation2 + $0x85]]
        %v1803 = vstv %s1802
        %v1804 = vmul.f32 %v1803, %v1468
        %v1805 = vmul.f32 %v1803, %v1469
        %1808 = vrot.lane.b32.xlu0 %v1804, 127
        %v1809 = vpop.permute.xlu0 %1808
        %1810 = vrot.lane.b32.xlu0 %v1805, 127
        %v1811 = vpop.permute.xlu0 %1810
        %v1814 = vadd.f32 %v1730, %v1809
        %v1815 = vadd.f32 %v1731, %v1811
        %s1816 = sld [smem:[#allocation2 + $0xa0]]
        %v1817 = vstv %s1816
        %v1818 = vmul.f32 %v1817, %v1468
        %v1819 = vmul.f32 %v1817, %v1469
        %1822 = vrot.lane.b32.xlu0 %v1818, 127
        %v1823 = vpop.permute.xlu0 %1822
        %1824 = vrot.lane.b32.xlu0 %v1819, 127
        %v1825 = vpop.permute.xlu0 %1824
        %v1828 = vadd.f32 %v1744, %v1823
        %v1829 = vadd.f32 %v1745, %v1825
        %s1830 = sld [smem:[#allocation2 + $0x8]]
        %v1831 = vstv %s1830
        %v1832 = vmul.f32 %v1831, %v1464
        %v1833 = vmul.f32 %v1831, %v1465
        %1836 = vrot.lane.b32.xlu0 %v1832, 126
        %v1837 = vpop.permute.xlu0 %1836
        %1838 = vrot.lane.b32.xlu0 %v1833, 126
        %v1839 = vpop.permute.xlu0 %1838
        %v1842 = vadd.f32 %v1758, %v1837
        %v1843 = vadd.f32 %v1759, %v1839
        %s1844 = sld [smem:[#allocation2 + $0x23]]
        %v1845 = vstv %s1844
        %v1846 = vmul.f32 %v1845, %v1464
        %v1847 = vmul.f32 %v1845, %v1465
        %1850 = vrot.lane.b32.xlu0 %v1846, 126
        %v1851 = vpop.permute.xlu0 %1850
        %1852 = vrot.lane.b32.xlu0 %v1847, 126
        %v1853 = vpop.permute.xlu0 %1852
        %v1856 = vadd.f32 %v1772, %v1851
        %v1857 = vadd.f32 %v1773, %v1853
        %s1858 = sld [smem:[#allocation2 + $0x3e]]
        %v1859 = vstv %s1858
        %v1860 = vmul.f32 %v1859, %v1464
        %v1861 = vmul.f32 %v1859, %v1465
        %1864 = vrot.lane.b32.xlu0 %v1860, 126
        %v1865 = vpop.permute.xlu0 %1864
        %1866 = vrot.lane.b32.xlu0 %v1861, 126
        %v1867 = vpop.permute.xlu0 %1866
        %v1870 = vadd.f32 %v1786, %v1865
        %v1871 = vadd.f32 %v1787, %v1867
        %s1872 = sld [smem:[#allocation2 + $0x59]]
        %v1873 = vstv %s1872
        %v1874 = vmul.f32 %v1873, %v1464
        %v1875 = vmul.f32 %v1873, %v1465
        %1878 = vrot.lane.b32.xlu0 %v1874, 126
        %v1879 = vpop.permute.xlu0 %1878
        %1880 = vrot.lane.b32.xlu0 %v1875, 126
        %v1881 = vpop.permute.xlu0 %1880
        %v1884 = vadd.f32 %v1800, %v1879
        %v1885 = vadd.f32 %v1801, %v1881
        %s1886 = sld [smem:[#allocation2 + $0x74]]
        %v1887 = vstv %s1886
        %v1888 = vmul.f32 %v1887, %v1464
        %v1889 = vmul.f32 %v1887, %v1465
        %1892 = vrot.lane.b32.xlu0 %v1888, 126
        %v1893 = vpop.permute.xlu0 %1892
        %1894 = vrot.lane.b32.xlu0 %v1889, 126
        %v1895 = vpop.permute.xlu0 %1894
        %v1898 = vadd.f32 %v1814, %v1893
        %v1899 = vadd.f32 %v1815, %v1895
        %s1900 = sld [smem:[#allocation2 + $0x8f]]
        %v1901 = vstv %s1900
        %v1902 = vmul.f32 %v1901, %v1464
        %v1903 = vmul.f32 %v1901, %v1465
        %1906 = vrot.lane.b32.xlu0 %v1902, 126
        %v1907 = vpop.permute.xlu0 %1906
        %1908 = vrot.lane.b32.xlu0 %v1903, 126
        %v1909 = vpop.permute.xlu0 %1908
        %v1912 = vadd.f32 %v1828, %v1907
        %v1913 = vadd.f32 %v1829, %v1909
        %s1914 = sld [smem:[#allocation2 + $0x11]]
        %v1915 = vstv %s1914
        %v1916 = vmul.f32 %v1915, %v1466
        %v1917 = vmul.f32 %v1915, %v1467
        %1920 = vrot.lane.b32.xlu0 %v1916, 126
        %v1921 = vpop.permute.xlu0 %1920
        %1922 = vrot.lane.b32.xlu0 %v1917, 126
        %v1923 = vpop.permute.xlu0 %1922
        %v1926 = vadd.f32 %v1842, %v1921
        %v1927 = vadd.f32 %v1843, %v1923
        %s1928 = sld [smem:[#allocation2 + $0x2c]]
        %v1929 = vstv %s1928
        %v1930 = vmul.f32 %v1929, %v1466
        %v1931 = vmul.f32 %v1929, %v1467
        %1934 = vrot.lane.b32.xlu0 %v1930, 126
        %v1935 = vpop.permute.xlu0 %1934
        %1936 = vrot.lane.b32.xlu0 %v1931, 126
        %v1937 = vpop.permute.xlu0 %1936
        %v1940 = vadd.f32 %v1856, %v1935
        %v1941 = vadd.f32 %v1857, %v1937
        %s1942 = sld [smem:[#allocation2 + $0x47]]
        %v1943 = vstv %s1942
        %v1944 = vmul.f32 %v1943, %v1466
        %v1945 = vmul.f32 %v1943, %v1467
        %1948 = vrot.lane.b32.xlu0 %v1944, 126
        %v1949 = vpop.permute.xlu0 %1948
        %1950 = vrot.lane.b32.xlu0 %v1945, 126
        %v1951 = vpop.permute.xlu0 %1950
        %v1954 = vadd.f32 %v1870, %v1949
        %v1955 = vadd.f32 %v1871, %v1951
        %s1956 = sld [smem:[#allocation2 + $0x62]]
        %v1957 = vstv %s1956
        %v1958 = vmul.f32 %v1957, %v1466
        %v1959 = vmul.f32 %v1957, %v1467
        %1962 = vrot.lane.b32.xlu0 %v1958, 126
        %v1963 = vpop.permute.xlu0 %1962
        %1964 = vrot.lane.b32.xlu0 %v1959, 126
        %v1965 = vpop.permute.xlu0 %1964
        %v1968 = vadd.f32 %v1884, %v1963
        %v1969 = vadd.f32 %v1885, %v1965
        %s1970 = sld [smem:[#allocation2 + $0x7d]]
        %v1971 = vstv %s1970
        %v1972 = vmul.f32 %v1971, %v1466
        %v1973 = vmul.f32 %v1971, %v1467
        %1976 = vrot.lane.b32.xlu0 %v1972, 126
        %v1977 = vpop.permute.xlu0 %1976
        %1978 = vrot.lane.b32.xlu0 %v1973, 126
        %v1979 = vpop.permute.xlu0 %1978
        %v1982 = vadd.f32 %v1898, %v1977
        %v1983 = vadd.f32 %v1899, %v1979
        %s1984 = sld [smem:[#allocation2 + $0x98]]
        %v1985 = vstv %s1984
        %v1986 = vmul.f32 %v1985, %v1466
        %v1987 = vmul.f32 %v1985, %v1467
        %1990 = vrot.lane.b32.xlu0 %v1986, 126
        %v1991 = vpop.permute.xlu0 %1990
        %1992 = vrot.lane.b32.xlu0 %v1987, 126
        %v1993 = vpop.permute.xlu0 %1992
        %v1996 = vadd.f32 %v1912, %v1991
        %v1997 = vadd.f32 %v1913, %v1993
        %s1998 = sld [smem:[#allocation2 + $0x1a]]
        %v1999 = vstv %s1998
        %v2000 = vmul.f32 %v1999, %v1468
        %v2001 = vmul.f32 %v1999, %v1469
        %2004 = vrot.lane.b32.xlu0 %v2000, 126
        %v2005 = vpop.permute.xlu0 %2004
        %2006 = vrot.lane.b32.xlu0 %v2001, 126
        %v2007 = vpop.permute.xlu0 %2006
        %v2010 = vadd.f32 %v1926, %v2005
        %v2011 = vadd.f32 %v1927, %v2007
        %s2012 = sld [smem:[#allocation2 + $0x35]]
        %v2013 = vstv %s2012
        %v2014 = vmul.f32 %v2013, %v1468
        %v2015 = vmul.f32 %v2013, %v1469
        %2018 = vrot.lane.b32.xlu0 %v2014, 126
        %v2019 = vpop.permute.xlu0 %2018
        %2020 = vrot.lane.b32.xlu0 %v2015, 126
        %v2021 = vpop.permute.xlu0 %2020
        %v2024 = vadd.f32 %v1940, %v2019
        %v2025 = vadd.f32 %v1941, %v2021
        %s2026 = sld [smem:[#allocation2 + $0x50]]
        %v2027 = vstv %s2026
        %v2028 = vmul.f32 %v2027, %v1468
        %v2029 = vmul.f32 %v2027, %v1469
        %2032 = vrot.lane.b32.xlu0 %v2028, 126
        %v2033 = vpop.permute.xlu0 %2032
        %2034 = vrot.lane.b32.xlu0 %v2029, 126
        %v2035 = vpop.permute.xlu0 %2034
        %v2038 = vadd.f32 %v1954, %v2033
        %v2039 = vadd.f32 %v1955, %v2035
        %s2040 = sld [smem:[#allocation2 + $0x6b]]
        %v2041 = vstv %s2040
        %v2042 = vmul.f32 %v2041, %v1468
        %v2043 = vmul.f32 %v2041, %v1469
        %2046 = vrot.lane.b32.xlu0 %v2042, 126
        %v2047 = vpop.permute.xlu0 %2046
        %2048 = vrot.lane.b32.xlu0 %v2043, 126
        %v2049 = vpop.permute.xlu0 %2048
        %v2052 = vadd.f32 %v1968, %v2047
        %v2053 = vadd.f32 %v1969, %v2049
        %s2054 = sld [smem:[#allocation2 + $0x86]]
        %v2055 = vstv %s2054
        %v2056 = vmul.f32 %v2055, %v1468
        %v2057 = vmul.f32 %v2055, %v1469
        %2060 = vrot.lane.b32.xlu0 %v2056, 126
        %v2061 = vpop.permute.xlu0 %2060
        %2062 = vrot.lane.b32.xlu0 %v2057, 126
        %v2063 = vpop.permute.xlu0 %2062
        %v2066 = vadd.f32 %v1982, %v2061
        %v2067 = vadd.f32 %v1983, %v2063
        %s2068 = sld [smem:[#allocation2 + $0xa1]]
        %v2069 = vstv %s2068
        %v2070 = vmul.f32 %v2069, %v1468
        %v2071 = vmul.f32 %v2069, %v1469
        %2074 = vrot.lane.b32.xlu0 %v2070, 126
        %v2075 = vpop.permute.xlu0 %2074
        %2076 = vrot.lane.b32.xlu0 %v2071, 126
        %v2077 = vpop.permute.xlu0 %2076
        %v2080 = vadd.f32 %v1996, %v2075
        %v2081 = vadd.f32 %v1997, %v2077
        %vm2082 = vcmask 113664
        %2083 = vst.msk [vmem:[%s215] sm:$0xff] %vm2082, %v2010
        %vm2084 = vcmask 111616
        %2085 = vst.msk [vmem:[%s215 + $0x8] sm:$0x3f] %vm2084, %v2011
        %2086 = vst.msk [vmem:[%s215 + $0x10] sm:$0xff] %vm2082, %v2024
        %2087 = vst.msk [vmem:[%s215 + $0x18] sm:$0x3f] %vm2084, %v2025
        %2088 = vst.msk [vmem:[%s215 + $0x20] sm:$0xff] %vm2082, %v2038
        %2089 = vst.msk [vmem:[%s215 + $0x28] sm:$0x3f] %vm2084, %v2039
        %2090 = vst.msk [vmem:[%s215 + $0x30] sm:$0xff] %vm2082, %v2052
        %2091 = vst.msk [vmem:[%s215 + $0x38] sm:$0x3f] %vm2084, %v2053
        %2092 = vst.msk [vmem:[%s215 + $0x40] sm:$0xff] %vm2082, %v2066
        %2093 = vst.msk [vmem:[%s215 + $0x48] sm:$0x3f] %vm2084, %v2067
        %2094 = vst.msk [vmem:[%s215 + $0x50] sm:$0xff] %vm2082, %v2080
        %2095 = vst.msk [vmem:[%s215 + $0x58] sm:$0x3f] %vm2084, %v2081
        %p2096 = scmp.lt.s32.totalorder %s19, 1
        %s2097 = scalar_select %p2096, %s19, 1
        %s2098 = smul.addr %s2097, 12
        %s2099 = smul.addr %s2098, 8
        %s2100 = scalar_lea.vmem %s3, %s2099
        // Predicated region
        $region45: #{tpu_custom_call.1} parent=31 // pred_check
          %p2101 = pneg %p105
        $region46: #{tpu_custom_call.1} parent=31 // pred_check_branch
          %2103 = sbr.rel (%p2101) target = $region48
        $region47: #{tpu_custom_call.1} parent=31 // pred_region
          _
        $region48: #{tpu_custom_call.1} parent=31 // pred_fallthru
          _
      $region32: #{tpu_custom_call.1} parent=5 // pred_fallthru
        _
      %p2104 = scmp.le.s32.totalorder 2, %s14
      // Predicated region
      $region49: #{tpu_custom_call.1} parent=5 // pred_check
        %p2105 = pneg %p2104
      $region50: #{tpu_custom_call.1} parent=5 // pred_check_branch
        %2107 = sbr.rel (%p2105) target = $region52
      $region51: #{tpu_custom_call.1} parent=5 // pred_region
        %s2108 = ssub.s32 %s14, 2
        // Predicated region
        $region53: #{tpu_custom_call.1} parent=51 // pred_check
          %p2109 = pneg %p111
        $region54: #{tpu_custom_call.1} parent=51 // pred_check_branch
          %2111 = sbr.rel (%p2109) target = $region56
        $region55: #{tpu_custom_call.1} parent=51 // pred_region
          %p2112 = scmp.lt.s32.totalorder %s20, 1
          %s2113 = scalar_select %p2112, %s20, 1
          %s2114 = smul.addr %s2113, 12
          %s2115 = smul.addr %s2114, 8
          %s2116 = scalar_lea.vmem %s3, %s2115
        $region56: #{tpu_custom_call.1} parent=51 // pred_fallthru
          _
      $region52: #{tpu_custom_call.1} parent=5 // pred_fallthru
        _
    $region6: #{tpu_custom_call.1} parent=1 // loop_footer
      %s18 = sadd.s32 1, %s14
    $region7: #{tpu_custom_call.1} parent=1 // loop_footer_branch
      %13 = sbr.rel target = $region3
    $region8: #{tpu_custom_call.1} parent=1 // loop_exit
      _
    %2117 = vsyncpa [#allocation3], 1
    %s2118 = scalar_lea.sflag [#allocation3], 1
    %2119 = vsyncpa %s2118, 1
    %2120 = vsyncpa [#allocation4], 1
    %s2121 = scalar_lea.sflag [#allocation4], 1
    %2122 = vsyncpa %s2121, 1
    %2123 = vsyncpa [#allocation5], 1
    %s2124 = scalar_lea.sflag [#allocation5], 1
    %2125 = vsyncpa %s2124, 1

</llo_original>
